<compile_context>
chip_gen: v7x
topology: tpu7x:2x2x1
jax: 0.10.0
libtpu: 0.0.40
codegen_flags: <defaults>
</compile_context>

<pallas_src>
import jax
import jax.numpy as jnp
from jax.experimental import pallas as pl
from jax.experimental.pallas import tpu as pltpu

IN_DIM = 768
NUM_CLASS = 10
HIDDEN = (IN_DIM + NUM_CLASS) // 2      # 389, matches (768 + num_class) // 2
HIDDEN_PAD = 512                        # lane-aligned hidden (zero-padded)
OUT_PAD = 128                           # lane-aligned output (zero-padded)


def _round_up(n, m):
    return (n + m - 1) // m * m


def mlp_kernel(x_ref, w1_ref, b1_ref, w2_ref, b2_ref, o_ref):
    # x arrives as f32 (single HBM read); cast to bf16 on the VPU right before
    # the MXU pass instead of a separate wrapper-side cast pass over HBM.
    x = x_ref[...].astype(jnp.bfloat16)
    # Layer 1: (tm, 768) @ (768, 512) + bias, ReLU  (f32 accumulation).
    h = jnp.dot(x, w1_ref[...], preferred_element_type=jnp.float32)
    h = jnp.maximum(h + b1_ref[...], 0.0)            # b1 is (1, 512), broadcasts
    # Layer 2: (tm, 512) @ (512, 128) + bias.
    y = jnp.dot(h.astype(w2_ref.dtype), w2_ref[...],
                preferred_element_type=jnp.float32)
    o_ref[...] = (y + b2_ref[...]).astype(o_ref.dtype)


def prepare_params(w1, b1, w2, b2, compute_dtype=jnp.bfloat16):
    """Zero-pad (hidden 389->512, classes 10->128) and cast weights once, outside
    the kernel.  Padding is zeros, so results are identical after slicing."""
    w1p = jnp.zeros((IN_DIM, HIDDEN_PAD), compute_dtype)
    w1p = w1p.at[:, :HIDDEN].set(w1.astype(compute_dtype))
    b1p = jnp.zeros((1, HIDDEN_PAD), jnp.float32)
    b1p = b1p.at[:, :HIDDEN].set(b1.astype(jnp.float32))
    w2p = jnp.zeros((HIDDEN_PAD, OUT_PAD), compute_dtype)
    w2p = w2p.at[:HIDDEN, :NUM_CLASS].set(w2.astype(compute_dtype))
    b2p = jnp.zeros((1, OUT_PAD), jnp.float32)
    b2p = b2p.at[:, :NUM_CLASS].set(b2.astype(jnp.float32))
    return w1p, b1p, w2p, b2p


def classifier_forward(x, params, *, block_m=512):
    """x: (B, 768) f32; params: output of prepare_params(). Returns (B, NUM_CLASS) f32."""
    w1p, b1p, w2p, b2p = params
    B = x.shape[0]

    # ---- batch tiling policy -------------------------------------------------
    if B <= 16:
        # Tiny batch: one block equal to the full batch dim (no ragged block,
        # no padding); a single grid step is optimal here anyway.
        tm = B
    else:
        # Balanced tiles <= block_m, and at least 2 grid steps so both v7x
        # TensorCores get work ("parallel" grid axis).  Harmless on v5e/v6e.
        n_tiles = max(pl.cdiv(B, block_m), 2)
        tm = _round_up(pl.cdiv(B, n_tiles), 16)
    grid_m = pl.cdiv(B, tm)

    # Advisory cost hint for XLA scheduling around the custom call.
    weight_bytes = (w1p.size * w1p.dtype.itemsize + w2p.size * w2p.dtype.itemsize
                    + b1p.size * b1p.dtype.itemsize + b2p.size * b2p.dtype.itemsize)
    cost = pl.CostEstimate(
        flops=2 * B * (IN_DIM * HIDDEN_PAD + HIDDEN_PAD * OUT_PAD),
        transcendentals=0,
        bytes_accessed=B * IN_DIM * x.dtype.itemsize + B * OUT_PAD * 4 + weight_bytes,
    )

    out = pl.pallas_call(
        mlp_kernel,
        out_shape=jax.ShapeDtypeStruct((B, OUT_PAD), jnp.float32),
        grid_spec=pl.GridSpec(
            grid=(grid_m,),
            in_specs=[
                # x: tiled along batch -> pipelined HBM->VMEM DMA per grid step.
                # Ragged last tile is masked by Pallas; rows are independent so
                # garbage padded rows cannot contaminate real rows.
                pl.BlockSpec((tm, IN_DIM), lambda i: (i, 0)),
                # Weights / biases: constant index_map -> stay VMEM-resident.
                pl.BlockSpec((IN_DIM, HIDDEN_PAD), lambda i: (0, 0)),
                pl.BlockSpec((1, HIDDEN_PAD), lambda i: (0, 0)),
                pl.BlockSpec((HIDDEN_PAD, OUT_PAD), lambda i: (0, 0)),
                pl.BlockSpec((1, OUT_PAD), lambda i: (0, 0)),
            ],
            out_specs=pl.BlockSpec((tm, OUT_PAD), lambda i: (i, 0)),
        ),
        compiler_params=pltpu.CompilerParams(
            # batch tiles are independent -> shard across TCs on v7x megacore.
            dimension_semantics=("parallel",),
        ),
        cost_estimate=cost,
    )(x, w1p, b1p, w2p, b2p)

    # Slice padded class dim back to the real 10 logits.
    return out[:, :NUM_CLASS]


def init_params(key):
    """Deterministic init mimicking nn.Linear's uniform(-1/sqrt(fan_in), +1/sqrt(fan_in))."""
    k1, k2, k3, k4 = jax.random.split(key, 4)
    bound1 = 1.0 / jnp.sqrt(IN_DIM)
    bound2 = 1.0 / jnp.sqrt(HIDDEN)
    w1 = jax.random.uniform(k1, (IN_DIM, HIDDEN), jnp.float32, -bound1, bound1)
    b1 = jax.random.uniform(k2, (HIDDEN,), jnp.float32, -bound1, bound1)
    w2 = jax.random.uniform(k3, (HIDDEN, NUM_CLASS), jnp.float32, -bound2, bound2)
    b2 = jax.random.uniform(k4, (NUM_CLASS,), jnp.float32, -bound2, bound2)
    return w1, b1, w2, b2


def _reference(x, w1, b1, w2, b2):
    return jnp.maximum(x @ w1 + b1, 0.0) @ w2 + b2


if __name__ == "__main__":
    key = jax.random.PRNGKey(0)
    k_x, k_x2, k_p = jax.random.split(key, 3)

    w1, b1, w2, b2 = init_params(k_p)
    params = prepare_params(w1, b1, w2, b2)

    # Small batch (full-dim single block path).
    B = 2
    x = jax.random.normal(k_x, (B, IN_DIM), jnp.float32)
    out = classifier_forward(x, params)
    jax.block_until_ready(out)
    ref = _reference(x, w1, b1, w2, b2)
    assert out.shape == (B, NUM_CLASS)
    assert jnp.allclose(out, ref, atol=3e-2, rtol=3e-2), "mismatch vs reference (B=2)"

    # Non-divisible batch (balanced tiles + ragged masked last block path).
    B2 = 40
    x2 = jax.random.normal(k_x2, (B2, IN_DIM), jnp.float32)
    out2 = classifier_forward(x2, params)
    jax.block_until_ready(out2)
    ref2 = _reference(x2, w1, b1, w2, b2)
    assert out2.shape == (B2, NUM_CLASS)
    assert jnp.allclose(out2, ref2, atol=3e-2, rtol=3e-2), "mismatch vs reference (B=40)"

    print("KERNEL_OK")
</pallas_src>

<mosaic_0001>
module attributes {stable_mosaic.version = 11 : i64} {
  func.func @mlp_kernel(%arg0: i32, %arg1: memref<2x768xf32, #tpu.memory_space<vmem>>, %arg2: memref<768x512xbf16, #tpu.memory_space<vmem>>, %arg3: memref<1x512xf32, #tpu.memory_space<vmem>>, %arg4: memref<512x128xbf16, #tpu.memory_space<vmem>>, %arg5: memref<1x128xf32, #tpu.memory_space<vmem>>, %arg6: memref<2x128xf32, #tpu.memory_space<vmem>>) attributes {dimension_semantics = [#tpu.dimension_semantics<parallel>], iteration_bounds = array<i64: 1>, scalar_prefetch = 0 : i64, scratch_operands = 0 : i64, tpu.core_type = #tpu.core_type<tc>, window_params = [{transform_indices = @transform_0, window_bounds = array<i64: 2, 768>}, {pipeline_mode = #tpu.pipeline_mode<synchronous>, transform_indices = @transform_1, window_bounds = array<i64: 768, 512>}, {pipeline_mode = #tpu.pipeline_mode<synchronous>, transform_indices = @transform_2, window_bounds = array<i64: 1, 512>}, {pipeline_mode = #tpu.pipeline_mode<synchronous>, transform_indices = @transform_3, window_bounds = array<i64: 512, 128>}, {pipeline_mode = #tpu.pipeline_mode<synchronous>, transform_indices = @transform_4, window_bounds = array<i64: 1, 128>}, {transform_indices = @transform_5, window_bounds = array<i64: 2, 128>}]} {
    %c0 = arith.constant 0 : index
    %c0_0 = arith.constant 0 : index
    %0 = vector.load %arg1[%c0, %c0_0] : memref<2x768xf32, #tpu.memory_space<vmem>>, vector<2x768xf32>
    %1 = arith.truncf %0 : vector<2x768xf32> to vector<2x768xbf16>
    %c0_1 = arith.constant 0 : index
    %c0_2 = arith.constant 0 : index
    %2 = vector.load %arg2[%c0_1, %c0_2] : memref<768x512xbf16, #tpu.memory_space<vmem>>, vector<768x512xbf16>
    %cst = arith.constant dense<0.000000e+00> : vector<2x512xf32>
    %3 = tpu.matmul %1, %2, %cst {dimension_numbers = #tpu.dot_dimension_numbers<[1], [0], [0], [1], [0, 0, 1, 1], [], []>} : vector<2x768xbf16>, vector<768x512xbf16>, vector<2x512xf32> -> vector<2x512xf32>
    %c0_3 = arith.constant 0 : index
    %c0_4 = arith.constant 0 : index
    %4 = vector.load %arg3[%c0_3, %c0_4] : memref<1x512xf32, #tpu.memory_space<vmem>>, vector<1x512xf32>
    %5 = vector.broadcast %4 : vector<1x512xf32> to vector<2x512xf32>
    %6 = arith.addf %3, %5 : vector<2x512xf32>
    %cst_5 = arith.constant 0.000000e+00 : f32
    %7 = vector.broadcast %cst_5 : f32 to vector<2x512xf32>
    %8 = arith.maximumf %6, %7 : vector<2x512xf32>
    %9 = arith.truncf %8 : vector<2x512xf32> to vector<2x512xbf16>
    %c0_6 = arith.constant 0 : index
    %c0_7 = arith.constant 0 : index
    %10 = vector.load %arg4[%c0_6, %c0_7] : memref<512x128xbf16, #tpu.memory_space<vmem>>, vector<512x128xbf16>
    %cst_8 = arith.constant dense<0.000000e+00> : vector<2x128xf32>
    %11 = tpu.matmul %9, %10, %cst_8 {dimension_numbers = #tpu.dot_dimension_numbers<[1], [0], [0], [1], [0, 0, 1, 1], [], []>} : vector<2x512xbf16>, vector<512x128xbf16>, vector<2x128xf32> -> vector<2x128xf32>
    %c0_9 = arith.constant 0 : index
    %c0_10 = arith.constant 0 : index
    %12 = vector.load %arg5[%c0_9, %c0_10] : memref<1x128xf32, #tpu.memory_space<vmem>>, vector<1x128xf32>
    %13 = vector.broadcast %12 : vector<1x128xf32> to vector<2x128xf32>
    %14 = arith.addf %11, %13 : vector<2x128xf32>
    %c0_11 = arith.constant 0 : index
    %c0_12 = arith.constant 0 : index
    %15 = vector.load %arg6[%c0_11, %c0_12] : memref<2x128xf32, #tpu.memory_space<vmem>>, vector<2x128xf32>
    tpu.vector_store %arg6[%c0_11, %c0_12], %14 {strides = array<i32>} : memref<2x128xf32, #tpu.memory_space<vmem>>, vector<2x128xf32>,
    return
  }
  func.func @transform_0(%arg0: i32) -> (i32, i32) {
    %c0_i32 = arith.constant 0 : i32
    %c0_i32_0 = arith.constant 0 : i32
    return %arg0, %c0_i32 : i32, i32
  }
  func.func @transform_1(%arg0: i32) -> (i32, i32) {
    %c0_i32 = arith.constant 0 : i32
    %c0_i32_0 = arith.constant 0 : i32
    %c0_i32_1 = arith.constant 0 : i32
    return %c0_i32, %c0_i32_0 : i32, i32
  }
  func.func @transform_2(%arg0: i32) -> (i32, i32) {
    %c0_i32 = arith.constant 0 : i32
    %c0_i32_0 = arith.constant 0 : i32
    %c0_i32_1 = arith.constant 0 : i32
    return %c0_i32, %c0_i32_0 : i32, i32
  }
  func.func @transform_3(%arg0: i32) -> (i32, i32) {
    %c0_i32 = arith.constant 0 : i32
    %c0_i32_0 = arith.constant 0 : i32
    %c0_i32_1 = arith.constant 0 : i32
    return %c0_i32, %c0_i32_0 : i32, i32
  }
  func.func @transform_4(%arg0: i32) -> (i32, i32) {
    %c0_i32 = arith.constant 0 : i32
    %c0_i32_0 = arith.constant 0 : i32
    %c0_i32_1 = arith.constant 0 : i32
    return %c0_i32, %c0_i32_0 : i32, i32
  }
  func.func @transform_5(%arg0: i32) -> (i32, i32) {
    %c0_i32 = arith.constant 0 : i32
    %c0_i32_0 = arith.constant 0 : i32
    return %arg0, %c0_i32 : i32, i32
  }
}

</mosaic_0001>

<llo_original>
// kernel: tpu_custom_call.1
$region0: #{tpu_custom_call.1}
  #allocation0 [shape = 'u32[]', space=smem, size = 0x4, offset = 0x4, fixed_abs, tag = 'smem constant byte address 0x4 - core index']
  #allocation1 [shape = 'u32[144,128]{1,0:T(1,128)}', space=vmem, size = 0x12000, scoped, tag = 'internal scratch']
  %s0 = inlined_call_operand.hbm [shape: f32[2,768], index: 0, kind: input, shape index: {}]
  %s1 = inlined_call_operand.hbm [shape: bf16[768,512], index: 1, kind: input, shape index: {}]
  %s2 = inlined_call_operand.vmem [shape: f32[1,512], index: 2, kind: input, shape index: {}]
  %s3 = inlined_call_operand.hbm [shape: bf16[512,128], index: 3, kind: input, shape index: {}]
  %s4 = inlined_call_operand.vmem [shape: f32[1,128], index: 4, kind: input, shape index: {}]
  %s5 = inlined_call_operand.hbm [shape: f32[2,128], index: 5, kind: output, shape index: {}]
  %s6 = sld [smem:[#allocation0]]
  $region42: #{tpu_custom_call.1} parent=0
    _
  %s8 = ssub.s32 1, %s6
  %s9 = scalar_select 0, %s8, %s6
  $region1: #{tpu_custom_call.1} parent=0
    #allocation2 [shape = 'u8[6144]{0}', space=vmem, size = 0x1800, scoped, tag = 'input window, operand 0, single buffered']
    #allocation3 [shape = 's32[1]{0}', space=sflag, size = 0x4, scoped, tag = 'scoped memory for tpu_custom_call.1']
    #allocation4 [shape = 's32[1]{0}', space=sflag, size = 0x4, scoped, tag = 'scoped memory for tpu_custom_call.1']
    #allocation5 [shape = 'u8[786432]{0}', space=vmem, size = 0xc0000, scoped, tag = 'input window, operand 1, single buffered']
    #allocation6 [shape = 's32[1]{0}', space=sflag, size = 0x4, scoped, tag = 'scoped memory for tpu_custom_call.1']
    #allocation7 [shape = 'u8[131072]{0}', space=vmem, size = 0x20000, scoped, tag = 'input window, operand 3, single buffered']
    #allocation8 [shape = 'u8[1024]{0}', space=vmem, size = 0x400, scoped, tag = 'output window, operand 0, single buffered']
    %10 = vsyncpa [#allocation3], 0
    %11 = vsyncpa [#allocation6], 0
    %12 = vsyncpa [#allocation4], 0
    // Predicated region
    $region2: #{tpu_custom_call.1} parent=1 // pred_check
      _
    $region3: #{tpu_custom_call.1} parent=1 // pred_check_branch
      %14 = sbr.rel (0) target = $region5
    $region4: #{tpu_custom_call.1} parent=1 // pred_region
      %s16 = ssub.s32 192, 192
      %17 = vsyncadd [#allocation3], %s16
      %s19 = sshll.u32 [#allocation2], 4
      %s20 = int_to_ptr.vmem [resolvable:$true] %s19
      %22 = dma.hbm_to_vmem [thread:$0]  %s0, 192, %s20, [#allocation3]
    $region5: #{tpu_custom_call.1} parent=1 // pred_fallthru
      _
    // Predicated region
    $region6: #{tpu_custom_call.1} parent=1 // pred_check
      _
    $region7: #{tpu_custom_call.1} parent=1 // pred_check_branch
      %24 = sbr.rel (0) target = $region9
    $region8: #{tpu_custom_call.1} parent=1 // pred_region
      %s26 = ssub.s32 24576, 24576
      %27 = vsyncadd [#allocation6], %s26
      %s28 = sshll.u32 [#allocation5], 4
      %s29 = int_to_ptr.vmem [resolvable:$true] %s28
      %34 = dma.hbm_to_vmem [thread:$0]  %s1, 24576, %s29, [#allocation6], 256, 256, 16
    $region9: #{tpu_custom_call.1} parent=1 // pred_fallthru
      _
    // Predicated region
    $region10: #{tpu_custom_call.1} parent=1 // pred_check
      _
    $region11: #{tpu_custom_call.1} parent=1 // pred_check_branch
      %36 = sbr.rel (0) target = $region13
    $region12: #{tpu_custom_call.1} parent=1 // pred_region
      _
    $region13: #{tpu_custom_call.1} parent=1 // pred_fallthru
      _
    // Predicated region
    $region14: #{tpu_custom_call.1} parent=1 // pred_check
      _
    $region15: #{tpu_custom_call.1} parent=1 // pred_check_branch
      %38 = sbr.rel (0) target = $region17
    $region16: #{tpu_custom_call.1} parent=1 // pred_region
      %s40 = ssub.s32 4096, 4096
      %41 = vsyncadd [#allocation6], %s40
      %s42 = sshll.u32 [#allocation7], 4
      %s43 = int_to_ptr.vmem [resolvable:$true] %s42
      %48 = dma.hbm_to_vmem [thread:$0]  %s3, 4096, %s43, [#allocation6], 64, 64, 4
    $region17: #{tpu_custom_call.1} parent=1 // pred_fallthru
      _
    // Predicated region
    $region18: #{tpu_custom_call.1} parent=1 // pred_check
      _
    $region19: #{tpu_custom_call.1} parent=1 // pred_check_branch
      %50 = sbr.rel (0) target = $region21
    $region20: #{tpu_custom_call.1} parent=1 // pred_region
      _
    $region21: #{tpu_custom_call.1} parent=1 // pred_fallthru
      _
    // Predicated region
    $region22: #{tpu_custom_call.1} parent=1 // pred_check
      _
    $region23: #{tpu_custom_call.1} parent=1 // pred_check_branch
      %52 = sbr.rel (0) target = $region25
    $region24: #{tpu_custom_call.1} parent=1 // pred_region
      %53 = dma.done [#allocation3], 192
    $region25: #{tpu_custom_call.1} parent=1 // pred_fallthru
      _
    // Predicated region
    $region26: #{tpu_custom_call.1} parent=1 // pred_check
      _
    $region27: #{tpu_custom_call.1} parent=1 // pred_check_branch
      %55 = sbr.rel (0) target = $region29
    $region28: #{tpu_custom_call.1} parent=1 // pred_region
      %56 = dma.done [#allocation6], 24576
    $region29: #{tpu_custom_call.1} parent=1 // pred_fallthru
      _
    // Predicated region
    $region30: #{tpu_custom_call.1} parent=1 // pred_check
      _
    $region31: #{tpu_custom_call.1} parent=1 // pred_check_branch
      %58 = sbr.rel (0) target = $region33
    $region32: #{tpu_custom_call.1} parent=1 // pred_region
      %59 = dma.done [#allocation6], 4096
    $region33: #{tpu_custom_call.1} parent=1 // pred_fallthru
      _
    %v61 = vld [vmem:[#allocation2] sm:$0xff]
    %v62 = vld [vmem:[#allocation2 + $0x8] sm:$0xf]
    %v65 = vcombine.high %v61, %v61
    %v67 = vunpack.c.l.s4 1983009808
    %v68 = vunpack.c.0.s8 %v67
    %v69 = vlaneseq
    %v70 = vshrl.u32 %v69, 7
    %v71 = vsub.s32 %v68, %v70
    %v72 = vrot.slane %v61, %v71
    %v74 = vunpack.c.l.s4 1983009808
    %v75 = vunpack.c.0.s8 %v74
    %v76 = vlaneseq
    %v77 = vshrl.u32 %v76, 7
    %v78 = vsub.s32 %v75, %v77
    %v79 = vrot.slane %v65, %v78
    %v80 = vcombine.high %v72, %v72
    %v81 = vcombine.high %v79, %v79
    %v83 = vunpack.c.l.s4 1983009808
    %v84 = vunpack.c.0.s8 %v83
    %v85 = vlaneseq
    %v86 = vshrl.u32 %v85, 7
    %v87 = vsub.s32 %v84, %v86
    %v88 = vrot.slane %v62, %v87
    %v89 = vcombine.high %v88, %v88
    %v96 = vpack.c.bf16 %v72, %v72
    %v97 = vpack.c.bf16 %v80, %v80
    %v98 = vpack.c.bf16 %v79, %v79
    %v99 = vpack.c.bf16 %v81, %v81
    %v100 = vpack.c.bf16 %v88, %v88
    %v101 = vpack.c.bf16 %v89, %v89
    %v102 = vld [vmem:[#allocation5] sm:$0xff]
    %v103 = vld [vmem:[#allocation5 + $0x8] sm:$0xff]
    %v104 = vld [vmem:[#allocation5 + $0x10] sm:$0xff]
    %v105 = vld [vmem:[#allocation5 + $0x18] sm:$0xff]
    %v106 = vld [vmem:[#allocation5 + $0x20] sm:$0xff]
    %v107 = vld [vmem:[#allocation5 + $0x28] sm:$0xff]
    %v108 = vld [vmem:[#allocation5 + $0x30] sm:$0xff]
    %v109 = vld [vmem:[#allocation5 + $0x38] sm:$0xff]
    %v110 = vld [vmem:[#allocation5 + $0x40] sm:$0xff]
    %v111 = vld [vmem:[#allocation5 + $0x48] sm:$0xff]
    %v112 = vld [vmem:[#allocation5 + $0x50] sm:$0xff]
    %v113 = vld [vmem:[#allocation5 + $0x58] sm:$0xff]
    %v114 = vld [vmem:[#allocation5 + $0x60] sm:$0xff]
    %v115 = vld [vmem:[#allocation5 + $0x68] sm:$0xff]
    %v116 = vld [vmem:[#allocation5 + $0x70] sm:$0xff]
    %v117 = vld [vmem:[#allocation5 + $0x78] sm:$0xff]
    %v118 = vld [vmem:[#allocation5 + $0x80] sm:$0xff]
    %v119 = vld [vmem:[#allocation5 + $0x88] sm:$0xff]
    %v120 = vld [vmem:[#allocation5 + $0x90] sm:$0xff]
    %v121 = vld [vmem:[#allocation5 + $0x98] sm:$0xff]
    %v122 = vld [vmem:[#allocation5 + $0xa0] sm:$0xff]
    %v123 = vld [vmem:[#allocation5 + $0xa8] sm:$0xff]
    %v124 = vld [vmem:[#allocation5 + $0xb0] sm:$0xff]
    %v125 = vld [vmem:[#allocation5 + $0xb8] sm:$0xff]
    %v126 = vld [vmem:[#allocation5 + $0xc0] sm:$0xff]
    %v127 = vld [vmem:[#allocation5 + $0xc8] sm:$0xff]
    %v128 = vld [vmem:[#allocation5 + $0xd0] sm:$0xff]
    %v129 = vld [vmem:[#allocation5 + $0xd8] sm:$0xff]
    %v130 = vld [vmem:[#allocation5 + $0xe0] sm:$0xff]
    %v131 = vld [vmem:[#allocation5 + $0xe8] sm:$0xff]
    %v132 = vld [vmem:[#allocation5 + $0xf0] sm:$0xff]
    %v133 = vld [vmem:[#allocation5 + $0xf8] sm:$0xff]
    %v134 = vld [vmem:[#allocation5 + $0x100] sm:$0xff]
    %v135 = vld [vmem:[#allocation5 + $0x108] sm:$0xff]
    %v136 = vld [vmem:[#allocation5 + $0x110] sm:$0xff]
    %v137 = vld [vmem:[#allocation5 + $0x118] sm:$0xff]
    %v138 = vld [vmem:[#allocation5 + $0x120] sm:$0xff]
    %v139 = vld [vmem:[#allocation5 + $0x128] sm:$0xff]
    %v140 = vld [vmem:[#allocation5 + $0x130] sm:$0xff]
    %v141 = vld [vmem:[#allocation5 + $0x138] sm:$0xff]
    %v142 = vld [vmem:[#allocation5 + $0x140] sm:$0xff]
    %v143 = vld [vmem:[#allocation5 + $0x148] sm:$0xff]
    %v144 = vld [vmem:[#allocation5 + $0x150] sm:$0xff]
    %v145 = vld [vmem:[#allocation5 + $0x158] sm:$0xff]
    %v146 = vld [vmem:[#allocation5 + $0x160] sm:$0xff]
    %v147 = vld [vmem:[#allocation5 + $0x168] sm:$0xff]
    %v148 = vld [vmem:[#allocation5 + $0x170] sm:$0xff]
    %v149 = vld [vmem:[#allocation5 + $0x178] sm:$0xff]
    %v150 = vld [vmem:[#allocation5 + $0x180] sm:$0xff]
    %v151 = vld [vmem:[#allocation5 + $0x188] sm:$0xff]
    %v152 = vld [vmem:[#allocation5 + $0x190] sm:$0xff]
    %v153 = vld [vmem:[#allocation5 + $0x198] sm:$0xff]
    %v154 = vld [vmem:[#allocation5 + $0x1a0] sm:$0xff]
    %v155 = vld [vmem:[#allocation5 + $0x1a8] sm:$0xff]
    %v156 = vld [vmem:[#allocation5 + $0x1b0] sm:$0xff]
    %v157 = vld [vmem:[#allocation5 + $0x1b8] sm:$0xff]
    %v158 = vld [vmem:[#allocation5 + $0x1c0] sm:$0xff]
    %v159 = vld [vmem:[#allocation5 + $0x1c8] sm:$0xff]
    %v160 = vld [vmem:[#allocation5 + $0x1d0] sm:$0xff]
    %v161 = vld [vmem:[#allocation5 + $0x1d8] sm:$0xff]
    %v162 = vld [vmem:[#allocation5 + $0x1e0] sm:$0xff]
    %v163 = vld [vmem:[#allocation5 + $0x1e8] sm:$0xff]
    %v164 = vld [vmem:[#allocation5 + $0x1f0] sm:$0xff]
    %v165 = vld [vmem:[#allocation5 + $0x1f8] sm:$0xff]
    %v166 = vld [vmem:[#allocation5 + $0x200] sm:$0xff]
    %v167 = vld [vmem:[#allocation5 + $0x208] sm:$0xff]
    %v168 = vld [vmem:[#allocation5 + $0x210] sm:$0xff]
    %v169 = vld [vmem:[#allocation5 + $0x218] sm:$0xff]
    %v170 = vld [vmem:[#allocation5 + $0x220] sm:$0xff]
    %v171 = vld [vmem:[#allocation5 + $0x228] sm:$0xff]
    %v172 = vld [vmem:[#allocation5 + $0x230] sm:$0xff]
    %v173 = vld [vmem:[#allocation5 + $0x238] sm:$0xff]
    %v174 = vld [vmem:[#allocation5 + $0x240] sm:$0xff]
    %v175 = vld [vmem:[#allocation5 + $0x248] sm:$0xff]
    %v176 = vld [vmem:[#allocation5 + $0x250] sm:$0xff]
    %v177 = vld [vmem:[#allocation5 + $0x258] sm:$0xff]
    %v178 = vld [vmem:[#allocation5 + $0x260] sm:$0xff]
    %v179 = vld [vmem:[#allocation5 + $0x268] sm:$0xff]
    %v180 = vld [vmem:[#allocation5 + $0x270] sm:$0xff]
    %v181 = vld [vmem:[#allocation5 + $0x278] sm:$0xff]
    %v182 = vld [vmem:[#allocation5 + $0x280] sm:$0xff]
    %v183 = vld [vmem:[#allocation5 + $0x288] sm:$0xff]
    %v184 = vld [vmem:[#allocation5 + $0x290] sm:$0xff]
    %v185 = vld [vmem:[#allocation5 + $0x298] sm:$0xff]
    %v186 = vld [vmem:[#allocation5 + $0x2a0] sm:$0xff]
    %v187 = vld [vmem:[#allocation5 + $0x2a8] sm:$0xff]
    %v188 = vld [vmem:[#allocation5 + $0x2b0] sm:$0xff]
    %v189 = vld [vmem:[#allocation5 + $0x2b8] sm:$0xff]
    %v190 = vld [vmem:[#allocation5 + $0x2c0] sm:$0xff]
    %v191 = vld [vmem:[#allocation5 + $0x2c8] sm:$0xff]
    %v192 = vld [vmem:[#allocation5 + $0x2d0] sm:$0xff]
    %v193 = vld [vmem:[#allocation5 + $0x2d8] sm:$0xff]
    %v194 = vld [vmem:[#allocation5 + $0x2e0] sm:$0xff]
    %v195 = vld [vmem:[#allocation5 + $0x2e8] sm:$0xff]
    %v196 = vld [vmem:[#allocation5 + $0x2f0] sm:$0xff]
    %v197 = vld [vmem:[#allocation5 + $0x2f8] sm:$0xff]
    %v198 = vld [vmem:[#allocation5 + $0x300] sm:$0xff]
    %v199 = vld [vmem:[#allocation5 + $0x308] sm:$0xff]
    %v200 = vld [vmem:[#allocation5 + $0x310] sm:$0xff]
    %v201 = vld [vmem:[#allocation5 + $0x318] sm:$0xff]
    %v202 = vld [vmem:[#allocation5 + $0x320] sm:$0xff]
    %v203 = vld [vmem:[#allocation5 + $0x328] sm:$0xff]
    %v204 = vld [vmem:[#allocation5 + $0x330] sm:$0xff]
    %v205 = vld [vmem:[#allocation5 + $0x338] sm:$0xff]
    %v206 = vld [vmem:[#allocation5 + $0x340] sm:$0xff]
    %v207 = vld [vmem:[#allocation5 + $0x348] sm:$0xff]
    %v208 = vld [vmem:[#allocation5 + $0x350] sm:$0xff]
    %v209 = vld [vmem:[#allocation5 + $0x358] sm:$0xff]
    %v210 = vld [vmem:[#allocation5 + $0x360] sm:$0xff]
    %v211 = vld [vmem:[#allocation5 + $0x368] sm:$0xff]
    %v212 = vld [vmem:[#allocation5 + $0x370] sm:$0xff]
    %v213 = vld [vmem:[#allocation5 + $0x378] sm:$0xff]
    %v214 = vld [vmem:[#allocation5 + $0x380] sm:$0xff]
    %v215 = vld [vmem:[#allocation5 + $0x388] sm:$0xff]
    %v216 = vld [vmem:[#allocation5 + $0x390] sm:$0xff]
    %v217 = vld [vmem:[#allocation5 + $0x398] sm:$0xff]
    %v218 = vld [vmem:[#allocation5 + $0x3a0] sm:$0xff]
    %v219 = vld [vmem:[#allocation5 + $0x3a8] sm:$0xff]
    %v220 = vld [vmem:[#allocation5 + $0x3b0] sm:$0xff]
    %v221 = vld [vmem:[#allocation5 + $0x3b8] sm:$0xff]
    %v222 = vld [vmem:[#allocation5 + $0x3c0] sm:$0xff]
    %v223 = vld [vmem:[#allocation5 + $0x3c8] sm:$0xff]
    %v224 = vld [vmem:[#allocation5 + $0x3d0] sm:$0xff]
    %v225 = vld [vmem:[#allocation5 + $0x3d8] sm:$0xff]
    %v226 = vld [vmem:[#allocation5 + $0x3e0] sm:$0xff]
    %v227 = vld [vmem:[#allocation5 + $0x3e8] sm:$0xff]
    %v228 = vld [vmem:[#allocation5 + $0x3f0] sm:$0xff]
    %v229 = vld [vmem:[#allocation5 + $0x3f8] sm:$0xff]
    %v230 = vld [vmem:[#allocation5 + $0x400] sm:$0xff]
    %v231 = vld [vmem:[#allocation5 + $0x408] sm:$0xff]
    %v232 = vld [vmem:[#allocation5 + $0x410] sm:$0xff]
    %v233 = vld [vmem:[#allocation5 + $0x418] sm:$0xff]
    %v234 = vld [vmem:[#allocation5 + $0x420] sm:$0xff]
    %v235 = vld [vmem:[#allocation5 + $0x428] sm:$0xff]
    %v236 = vld [vmem:[#allocation5 + $0x430] sm:$0xff]
    %v237 = vld [vmem:[#allocation5 + $0x438] sm:$0xff]
    %v238 = vld [vmem:[#allocation5 + $0x440] sm:$0xff]
    %v239 = vld [vmem:[#allocation5 + $0x448] sm:$0xff]
    %v240 = vld [vmem:[#allocation5 + $0x450] sm:$0xff]
    %v241 = vld [vmem:[#allocation5 + $0x458] sm:$0xff]
    %v242 = vld [vmem:[#allocation5 + $0x460] sm:$0xff]
    %v243 = vld [vmem:[#allocation5 + $0x468] sm:$0xff]
    %v244 = vld [vmem:[#allocation5 + $0x470] sm:$0xff]
    %v245 = vld [vmem:[#allocation5 + $0x478] sm:$0xff]
    %v246 = vld [vmem:[#allocation5 + $0x480] sm:$0xff]
    %v247 = vld [vmem:[#allocation5 + $0x488] sm:$0xff]
    %v248 = vld [vmem:[#allocation5 + $0x490] sm:$0xff]
    %v249 = vld [vmem:[#allocation5 + $0x498] sm:$0xff]
    %v250 = vld [vmem:[#allocation5 + $0x4a0] sm:$0xff]
    %v251 = vld [vmem:[#allocation5 + $0x4a8] sm:$0xff]
    %v252 = vld [vmem:[#allocation5 + $0x4b0] sm:$0xff]
    %v253 = vld [vmem:[#allocation5 + $0x4b8] sm:$0xff]
    %v254 = vld [vmem:[#allocation5 + $0x4c0] sm:$0xff]
    %v255 = vld [vmem:[#allocation5 + $0x4c8] sm:$0xff]
    %v256 = vld [vmem:[#allocation5 + $0x4d0] sm:$0xff]
    %v257 = vld [vmem:[#allocation5 + $0x4d8] sm:$0xff]
    %v258 = vld [vmem:[#allocation5 + $0x4e0] sm:$0xff]
    %v259 = vld [vmem:[#allocation5 + $0x4e8] sm:$0xff]
    %v260 = vld [vmem:[#allocation5 + $0x4f0] sm:$0xff]
    %v261 = vld [vmem:[#allocation5 + $0x4f8] sm:$0xff]
    %v262 = vld [vmem:[#allocation5 + $0x500] sm:$0xff]
    %v263 = vld [vmem:[#allocation5 + $0x508] sm:$0xff]
    %v264 = vld [vmem:[#allocation5 + $0x510] sm:$0xff]
    %v265 = vld [vmem:[#allocation5 + $0x518] sm:$0xff]
    %v266 = vld [vmem:[#allocation5 + $0x520] sm:$0xff]
    %v267 = vld [vmem:[#allocation5 + $0x528] sm:$0xff]
    %v268 = vld [vmem:[#allocation5 + $0x530] sm:$0xff]
    %v269 = vld [vmem:[#allocation5 + $0x538] sm:$0xff]
    %v270 = vld [vmem:[#allocation5 + $0x540] sm:$0xff]
    %v271 = vld [vmem:[#allocation5 + $0x548] sm:$0xff]
    %v272 = vld [vmem:[#allocation5 + $0x550] sm:$0xff]
    %v273 = vld [vmem:[#allocation5 + $0x558] sm:$0xff]
    %v274 = vld [vmem:[#allocation5 + $0x560] sm:$0xff]
    %v275 = vld [vmem:[#allocation5 + $0x568] sm:$0xff]
    %v276 = vld [vmem:[#allocation5 + $0x570] sm:$0xff]
    %v277 = vld [vmem:[#allocation5 + $0x578] sm:$0xff]
    %v278 = vld [vmem:[#allocation5 + $0x580] sm:$0xff]
    %v279 = vld [vmem:[#allocation5 + $0x588] sm:$0xff]
    %v280 = vld [vmem:[#allocation5 + $0x590] sm:$0xff]
    %v281 = vld [vmem:[#allocation5 + $0x598] sm:$0xff]
    %v282 = vld [vmem:[#allocation5 + $0x5a0] sm:$0xff]
    %v283 = vld [vmem:[#allocation5 + $0x5a8] sm:$0xff]
    %v284 = vld [vmem:[#allocation5 + $0x5b0] sm:$0xff]
    %v285 = vld [vmem:[#allocation5 + $0x5b8] sm:$0xff]
    %v286 = vld [vmem:[#allocation5 + $0x5c0] sm:$0xff]
    %v287 = vld [vmem:[#allocation5 + $0x5c8] sm:$0xff]
    %v288 = vld [vmem:[#allocation5 + $0x5d0] sm:$0xff]
    %v289 = vld [vmem:[#allocation5 + $0x5d8] sm:$0xff]
    %v290 = vld [vmem:[#allocation5 + $0x5e0] sm:$0xff]
    %v291 = vld [vmem:[#allocation5 + $0x5e8] sm:$0xff]
    %v292 = vld [vmem:[#allocation5 + $0x5f0] sm:$0xff]
    %v293 = vld [vmem:[#allocation5 + $0x5f8] sm:$0xff]
    %v294 = vld [vmem:[%s2] sm:$0xf]
    %v296 = vlaneseq
    %v297 = vshrl.u32 %v296, 7
    %v298 = vsub.s32 0, %v297
    %v299 = vrot.slane %v294, %v298
    %v300 = vlaneseq
    %v301 = vshrl.u32 %v300, 7
    %v302 = vsub.s32 1, %v301
    %v303 = vrot.slane %v294, %v302
    %v304 = vlaneseq
    %v305 = vshrl.u32 %v304, 7
    %v306 = vsub.s32 2, %v305
    %v307 = vrot.slane %v294, %v306
    %v308 = vlaneseq
    %v309 = vshrl.u32 %v308, 7
    %v310 = vsub.s32 3, %v309
    %v311 = vrot.slane %v294, %v310
    %v508 = vunpack.c.l.b16 %v102
    %v509 = vunpack.c.h.b16 %v102
    %v510 = vunpack.c.l.b16 %v103
    %v511 = vunpack.c.h.b16 %v103
    %v512 = vunpack.c.l.b16 %v104
    %v513 = vunpack.c.h.b16 %v104
    %v514 = vunpack.c.l.b16 %v105
    %v515 = vunpack.c.h.b16 %v105
    %v516 = vunpack.c.l.b16 %v106
    %v517 = vunpack.c.h.b16 %v106
    %v518 = vunpack.c.l.b16 %v107
    %v519 = vunpack.c.h.b16 %v107
    %v520 = vunpack.c.l.b16 %v108
    %v521 = vunpack.c.h.b16 %v108
    %v522 = vunpack.c.l.b16 %v109
    %v523 = vunpack.c.h.b16 %v109
    %v524 = vunpack.c.l.b16 %v110
    %v525 = vunpack.c.h.b16 %v110
    %v526 = vunpack.c.l.b16 %v111
    %v527 = vunpack.c.h.b16 %v111
    %v528 = vunpack.c.l.b16 %v112
    %v529 = vunpack.c.h.b16 %v112
    %v530 = vunpack.c.l.b16 %v113
    %v531 = vunpack.c.h.b16 %v113
    %v532 = vunpack.c.l.b16 %v114
    %v533 = vunpack.c.h.b16 %v114
    %v534 = vunpack.c.l.b16 %v115
    %v535 = vunpack.c.h.b16 %v115
    %v536 = vunpack.c.l.b16 %v116
    %v537 = vunpack.c.h.b16 %v116
    %v538 = vunpack.c.l.b16 %v117
    %v539 = vunpack.c.h.b16 %v117
    %v540 = vunpack.c.l.b16 %v118
    %v541 = vunpack.c.h.b16 %v118
    %v542 = vunpack.c.l.b16 %v119
    %v543 = vunpack.c.h.b16 %v119
    %v544 = vunpack.c.l.b16 %v120
    %v545 = vunpack.c.h.b16 %v120
    %v546 = vunpack.c.l.b16 %v121
    %v547 = vunpack.c.h.b16 %v121
    %v548 = vunpack.c.l.b16 %v122
    %v549 = vunpack.c.h.b16 %v122
    %v550 = vunpack.c.l.b16 %v123
    %v551 = vunpack.c.h.b16 %v123
    %v552 = vunpack.c.l.b16 %v124
    %v553 = vunpack.c.h.b16 %v124
    %v554 = vunpack.c.l.b16 %v125
    %v555 = vunpack.c.h.b16 %v125
    %v556 = vunpack.c.l.b16 %v126
    %v557 = vunpack.c.h.b16 %v126
    %v558 = vunpack.c.l.b16 %v127
    %v559 = vunpack.c.h.b16 %v127
    %v560 = vunpack.c.l.b16 %v128
    %v561 = vunpack.c.h.b16 %v128
    %v562 = vunpack.c.l.b16 %v129
    %v563 = vunpack.c.h.b16 %v129
    %v564 = vunpack.c.l.b16 %v130
    %v565 = vunpack.c.h.b16 %v130
    %v566 = vunpack.c.l.b16 %v131
    %v567 = vunpack.c.h.b16 %v131
    %v568 = vunpack.c.l.b16 %v132
    %v569 = vunpack.c.h.b16 %v132
    %v570 = vunpack.c.l.b16 %v133
    %v571 = vunpack.c.h.b16 %v133
    %v572 = vunpack.c.l.b16 %v134
    %v573 = vunpack.c.h.b16 %v134
    %v574 = vunpack.c.l.b16 %v135
    %v575 = vunpack.c.h.b16 %v135
    %v576 = vunpack.c.l.b16 %v136
    %v577 = vunpack.c.h.b16 %v136
    %v578 = vunpack.c.l.b16 %v137
    %v579 = vunpack.c.h.b16 %v137
    %v580 = vunpack.c.l.b16 %v138
    %v581 = vunpack.c.h.b16 %v138
    %v582 = vunpack.c.l.b16 %v139
    %v583 = vunpack.c.h.b16 %v139
    %v584 = vunpack.c.l.b16 %v140
    %v585 = vunpack.c.h.b16 %v140
    %v586 = vunpack.c.l.b16 %v141
    %v587 = vunpack.c.h.b16 %v141
    %v588 = vunpack.c.l.b16 %v142
    %v589 = vunpack.c.h.b16 %v142
    %v590 = vunpack.c.l.b16 %v143
    %v591 = vunpack.c.h.b16 %v143
    %v592 = vunpack.c.l.b16 %v144
    %v593 = vunpack.c.h.b16 %v144
    %v594 = vunpack.c.l.b16 %v145
    %v595 = vunpack.c.h.b16 %v145
    %v596 = vunpack.c.l.b16 %v146
    %v597 = vunpack.c.h.b16 %v146
    %v598 = vunpack.c.l.b16 %v147
    %v599 = vunpack.c.h.b16 %v147
    %v600 = vunpack.c.l.b16 %v148
    %v601 = vunpack.c.h.b16 %v148
    %v602 = vunpack.c.l.b16 %v149
    %v603 = vunpack.c.h.b16 %v149
    %v604 = vunpack.c.l.b16 %v150
    %v605 = vunpack.c.h.b16 %v150
    %v606 = vunpack.c.l.b16 %v151
    %v607 = vunpack.c.h.b16 %v151
    %v608 = vunpack.c.l.b16 %v152
    %v609 = vunpack.c.h.b16 %v152
    %v610 = vunpack.c.l.b16 %v153
    %v611 = vunpack.c.h.b16 %v153
    %v612 = vunpack.c.l.b16 %v154
    %v613 = vunpack.c.h.b16 %v154
    %v614 = vunpack.c.l.b16 %v155
    %v615 = vunpack.c.h.b16 %v155
    %v616 = vunpack.c.l.b16 %v156
    %v617 = vunpack.c.h.b16 %v156
    %v618 = vunpack.c.l.b16 %v157
    %v619 = vunpack.c.h.b16 %v157
    %v620 = vunpack.c.l.b16 %v158
    %v621 = vunpack.c.h.b16 %v158
    %v622 = vunpack.c.l.b16 %v159
    %v623 = vunpack.c.h.b16 %v159
    %v624 = vunpack.c.l.b16 %v160
    %v625 = vunpack.c.h.b16 %v160
    %v626 = vunpack.c.l.b16 %v161
    %v627 = vunpack.c.h.b16 %v161
    %v628 = vunpack.c.l.b16 %v162
    %v629 = vunpack.c.h.b16 %v162
    %v630 = vunpack.c.l.b16 %v163
    %v631 = vunpack.c.h.b16 %v163
    %v632 = vunpack.c.l.b16 %v164
    %v633 = vunpack.c.h.b16 %v164
    %v634 = vunpack.c.l.b16 %v165
    %v635 = vunpack.c.h.b16 %v165
    %v636 = vunpack.c.l.b16 %v166
    %v637 = vunpack.c.h.b16 %v166
    %v638 = vunpack.c.l.b16 %v167
    %v639 = vunpack.c.h.b16 %v167
    %v640 = vunpack.c.l.b16 %v168
    %v641 = vunpack.c.h.b16 %v168
    %v642 = vunpack.c.l.b16 %v169
    %v643 = vunpack.c.h.b16 %v169
    %v644 = vunpack.c.l.b16 %v170
    %v645 = vunpack.c.h.b16 %v170
    %v646 = vunpack.c.l.b16 %v171
    %v647 = vunpack.c.h.b16 %v171
    %v648 = vunpack.c.l.b16 %v172
    %v649 = vunpack.c.h.b16 %v172
    %v650 = vunpack.c.l.b16 %v173
    %v651 = vunpack.c.h.b16 %v173
    %v652 = vunpack.c.l.b16 %v174
    %v653 = vunpack.c.h.b16 %v174
    %v654 = vunpack.c.l.b16 %v175
    %v655 = vunpack.c.h.b16 %v175
    %v656 = vunpack.c.l.b16 %v176
    %v657 = vunpack.c.h.b16 %v176
    %v658 = vunpack.c.l.b16 %v177
    %v659 = vunpack.c.h.b16 %v177
    %v660 = vunpack.c.l.b16 %v178
    %v661 = vunpack.c.h.b16 %v178
    %v662 = vunpack.c.l.b16 %v179
    %v663 = vunpack.c.h.b16 %v179
    %v664 = vunpack.c.l.b16 %v180
    %v665 = vunpack.c.h.b16 %v180
    %v666 = vunpack.c.l.b16 %v181
    %v667 = vunpack.c.h.b16 %v181
    %v668 = vunpack.c.l.b16 %v182
    %v669 = vunpack.c.h.b16 %v182
    %v670 = vunpack.c.l.b16 %v183
    %v671 = vunpack.c.h.b16 %v183
    %v672 = vunpack.c.l.b16 %v184
    %v673 = vunpack.c.h.b16 %v184
    %v674 = vunpack.c.l.b16 %v185
    %v675 = vunpack.c.h.b16 %v185
    %v676 = vunpack.c.l.b16 %v186
    %v677 = vunpack.c.h.b16 %v186
    %v678 = vunpack.c.l.b16 %v187
    %v679 = vunpack.c.h.b16 %v187
    %v680 = vunpack.c.l.b16 %v188
    %v681 = vunpack.c.h.b16 %v188
    %v682 = vunpack.c.l.b16 %v189
    %v683 = vunpack.c.h.b16 %v189
    %v684 = vunpack.c.l.b16 %v190
    %v685 = vunpack.c.h.b16 %v190
    %v686 = vunpack.c.l.b16 %v191
    %v687 = vunpack.c.h.b16 %v191
    %v688 = vunpack.c.l.b16 %v192
    %v689 = vunpack.c.h.b16 %v192
    %v690 = vunpack.c.l.b16 %v193
    %v691 = vunpack.c.h.b16 %v193
    %v692 = vunpack.c.l.b16 %v194
    %v693 = vunpack.c.h.b16 %v194
    %v694 = vunpack.c.l.b16 %v195
    %v695 = vunpack.c.h.b16 %v195
    %v696 = vunpack.c.l.b16 %v196
    %v697 = vunpack.c.h.b16 %v196
    %v698 = vunpack.c.l.b16 %v197
    %v699 = vunpack.c.h.b16 %v197
    %v700 = vunpack.c.l.b16 %v198
    %v701 = vunpack.c.h.b16 %v198
    %v702 = vunpack.c.l.b16 %v199
    %v703 = vunpack.c.h.b16 %v199
    %v704 = vunpack.c.l.b16 %v200
    %v705 = vunpack.c.h.b16 %v200
    %v706 = vunpack.c.l.b16 %v201
    %v707 = vunpack.c.h.b16 %v201
    %v708 = vunpack.c.l.b16 %v202
    %v709 = vunpack.c.h.b16 %v202
    %v710 = vunpack.c.l.b16 %v203
    %v711 = vunpack.c.h.b16 %v203
    %v712 = vunpack.c.l.b16 %v204
    %v713 = vunpack.c.h.b16 %v204
    %v714 = vunpack.c.l.b16 %v205
    %v715 = vunpack.c.h.b16 %v205
    %v716 = vunpack.c.l.b16 %v206
    %v717 = vunpack.c.h.b16 %v206
    %v718 = vunpack.c.l.b16 %v207
    %v719 = vunpack.c.h.b16 %v207
    %v720 = vunpack.c.l.b16 %v208
    %v721 = vunpack.c.h.b16 %v208
    %v722 = vunpack.c.l.b16 %v209
    %v723 = vunpack.c.h.b16 %v209
    %v724 = vunpack.c.l.b16 %v210
    %v725 = vunpack.c.h.b16 %v210
    %v726 = vunpack.c.l.b16 %v211
    %v727 = vunpack.c.h.b16 %v211
    %v728 = vunpack.c.l.b16 %v212
    %v729 = vunpack.c.h.b16 %v212
    %v730 = vunpack.c.l.b16 %v213
    %v731 = vunpack.c.h.b16 %v213
    %v732 = vunpack.c.l.b16 %v214
    %v733 = vunpack.c.h.b16 %v214
    %v734 = vunpack.c.l.b16 %v215
    %v735 = vunpack.c.h.b16 %v215
    %v736 = vunpack.c.l.b16 %v216
    %v737 = vunpack.c.h.b16 %v216
    %v738 = vunpack.c.l.b16 %v217
    %v739 = vunpack.c.h.b16 %v217
    %v740 = vunpack.c.l.b16 %v218
    %v741 = vunpack.c.h.b16 %v218
    %v742 = vunpack.c.l.b16 %v219
    %v743 = vunpack.c.h.b16 %v219
    %v744 = vunpack.c.l.b16 %v220
    %v745 = vunpack.c.h.b16 %v220
    %v746 = vunpack.c.l.b16 %v221
    %v747 = vunpack.c.h.b16 %v221
    %v748 = vunpack.c.l.b16 %v222
    %v749 = vunpack.c.h.b16 %v222
    %v750 = vunpack.c.l.b16 %v223
    %v751 = vunpack.c.h.b16 %v223
    %v752 = vunpack.c.l.b16 %v224
    %v753 = vunpack.c.h.b16 %v224
    %v754 = vunpack.c.l.b16 %v225
    %v755 = vunpack.c.h.b16 %v225
    %v756 = vunpack.c.l.b16 %v226
    %v757 = vunpack.c.h.b16 %v226
    %v758 = vunpack.c.l.b16 %v227
    %v759 = vunpack.c.h.b16 %v227
    %v760 = vunpack.c.l.b16 %v228
    %v761 = vunpack.c.h.b16 %v228
    %v762 = vunpack.c.l.b16 %v229
    %v763 = vunpack.c.h.b16 %v229
    %v764 = vunpack.c.l.b16 %v230
    %v765 = vunpack.c.h.b16 %v230
    %v766 = vunpack.c.l.b16 %v231
    %v767 = vunpack.c.h.b16 %v231
    %v768 = vunpack.c.l.b16 %v232
    %v769 = vunpack.c.h.b16 %v232
    %v770 = vunpack.c.l.b16 %v233
    %v771 = vunpack.c.h.b16 %v233
    %v772 = vunpack.c.l.b16 %v234
    %v773 = vunpack.c.h.b16 %v234
    %v774 = vunpack.c.l.b16 %v235
    %v775 = vunpack.c.h.b16 %v235
    %v776 = vunpack.c.l.b16 %v236
    %v777 = vunpack.c.h.b16 %v236
    %v778 = vunpack.c.l.b16 %v237
    %v779 = vunpack.c.h.b16 %v237
    %v780 = vunpack.c.l.b16 %v238
    %v781 = vunpack.c.h.b16 %v238
    %v782 = vunpack.c.l.b16 %v239
    %v783 = vunpack.c.h.b16 %v239
    %v784 = vunpack.c.l.b16 %v240
    %v785 = vunpack.c.h.b16 %v240
    %v786 = vunpack.c.l.b16 %v241
    %v787 = vunpack.c.h.b16 %v241
    %v788 = vunpack.c.l.b16 %v242
    %v789 = vunpack.c.h.b16 %v242
    %v790 = vunpack.c.l.b16 %v243
    %v791 = vunpack.c.h.b16 %v243
    %v792 = vunpack.c.l.b16 %v244
    %v793 = vunpack.c.h.b16 %v244
    %v794 = vunpack.c.l.b16 %v245
    %v795 = vunpack.c.h.b16 %v245
    %v796 = vunpack.c.l.b16 %v246
    %v797 = vunpack.c.h.b16 %v246
    %v798 = vunpack.c.l.b16 %v247
    %v799 = vunpack.c.h.b16 %v247
    %v800 = vunpack.c.l.b16 %v248
    %v801 = vunpack.c.h.b16 %v248
    %v802 = vunpack.c.l.b16 %v249
    %v803 = vunpack.c.h.b16 %v249
    %v804 = vunpack.c.l.b16 %v250
    %v805 = vunpack.c.h.b16 %v250
    %v806 = vunpack.c.l.b16 %v251
    %v807 = vunpack.c.h.b16 %v251
    %v808 = vunpack.c.l.b16 %v252
    %v809 = vunpack.c.h.b16 %v252
    %v810 = vunpack.c.l.b16 %v253
    %v811 = vunpack.c.h.b16 %v253
    %v812 = vunpack.c.l.b16 %v254
    %v813 = vunpack.c.h.b16 %v254
    %v814 = vunpack.c.l.b16 %v255
    %v815 = vunpack.c.h.b16 %v255
    %v816 = vunpack.c.l.b16 %v256
    %v817 = vunpack.c.h.b16 %v256
    %v818 = vunpack.c.l.b16 %v257
    %v819 = vunpack.c.h.b16 %v257
    %v820 = vunpack.c.l.b16 %v258
    %v821 = vunpack.c.h.b16 %v258
    %v822 = vunpack.c.l.b16 %v259
    %v823 = vunpack.c.h.b16 %v259
    %v824 = vunpack.c.l.b16 %v260
    %v825 = vunpack.c.h.b16 %v260
    %v826 = vunpack.c.l.b16 %v261
    %v827 = vunpack.c.h.b16 %v261
    %v828 = vunpack.c.l.b16 %v262
    %v829 = vunpack.c.h.b16 %v262
    %v830 = vunpack.c.l.b16 %v263
    %v831 = vunpack.c.h.b16 %v263
    %v832 = vunpack.c.l.b16 %v264
    %v833 = vunpack.c.h.b16 %v264
    %v834 = vunpack.c.l.b16 %v265
    %v835 = vunpack.c.h.b16 %v265
    %v836 = vunpack.c.l.b16 %v266
    %v837 = vunpack.c.h.b16 %v266
    %v838 = vunpack.c.l.b16 %v267
    %v839 = vunpack.c.h.b16 %v267
    %v840 = vunpack.c.l.b16 %v268
    %v841 = vunpack.c.h.b16 %v268
    %v842 = vunpack.c.l.b16 %v269
    %v843 = vunpack.c.h.b16 %v269
    %v844 = vunpack.c.l.b16 %v270
    %v845 = vunpack.c.h.b16 %v270
    %v846 = vunpack.c.l.b16 %v271
    %v847 = vunpack.c.h.b16 %v271
    %v848 = vunpack.c.l.b16 %v272
    %v849 = vunpack.c.h.b16 %v272
    %v850 = vunpack.c.l.b16 %v273
    %v851 = vunpack.c.h.b16 %v273
    %v852 = vunpack.c.l.b16 %v274
    %v853 = vunpack.c.h.b16 %v274
    %v854 = vunpack.c.l.b16 %v275
    %v855 = vunpack.c.h.b16 %v275
    %v856 = vunpack.c.l.b16 %v276
    %v857 = vunpack.c.h.b16 %v276
    %v858 = vunpack.c.l.b16 %v277
    %v859 = vunpack.c.h.b16 %v277
    %v860 = vunpack.c.l.b16 %v278
    %v861 = vunpack.c.h.b16 %v278
    %v862 = vunpack.c.l.b16 %v279
    %v863 = vunpack.c.h.b16 %v279
    %v864 = vunpack.c.l.b16 %v280
    %v865 = vunpack.c.h.b16 %v280
    %v866 = vunpack.c.l.b16 %v281
    %v867 = vunpack.c.h.b16 %v281
    %v868 = vunpack.c.l.b16 %v282
    %v869 = vunpack.c.h.b16 %v282
    %v870 = vunpack.c.l.b16 %v283
    %v871 = vunpack.c.h.b16 %v283
    %v872 = vunpack.c.l.b16 %v284
    %v873 = vunpack.c.h.b16 %v284
    %v874 = vunpack.c.l.b16 %v285
    %v875 = vunpack.c.h.b16 %v285
    %v876 = vunpack.c.l.b16 %v286
    %v877 = vunpack.c.h.b16 %v286
    %v878 = vunpack.c.l.b16 %v287
    %v879 = vunpack.c.h.b16 %v287
    %v880 = vunpack.c.l.b16 %v288
    %v881 = vunpack.c.h.b16 %v288
    %v882 = vunpack.c.l.b16 %v289
    %v883 = vunpack.c.h.b16 %v289
    %v884 = vunpack.c.l.b16 %v290
    %v885 = vunpack.c.h.b16 %v290
    %v886 = vunpack.c.l.b16 %v291
    %v887 = vunpack.c.h.b16 %v291
    %v888 = vunpack.c.l.b16 %v292
    %v889 = vunpack.c.h.b16 %v292
    %v890 = vunpack.c.l.b16 %v293
    %v891 = vunpack.c.h.b16 %v293
    %v892 = vpack.c.b16 %v512, %v508
    %v893 = vpack.c.b16 %v513, %v509
    %v894 = vpack.c.b16 %v514, %v510
    %v895 = vpack.c.b16 %v515, %v511
    %v896 = vpack.c.b16 %v520, %v516
    %v897 = vpack.c.b16 %v521, %v517
    %v898 = vpack.c.b16 %v522, %v518
    %v899 = vpack.c.b16 %v523, %v519
    %v900 = vpack.c.b16 %v528, %v524
    %v901 = vpack.c.b16 %v529, %v525
    %v902 = vpack.c.b16 %v530, %v526
    %v903 = vpack.c.b16 %v531, %v527
    %v904 = vpack.c.b16 %v536, %v532
    %v905 = vpack.c.b16 %v537, %v533
    %v906 = vpack.c.b16 %v538, %v534
    %v907 = vpack.c.b16 %v539, %v535
    %v908 = vpack.c.b16 %v544, %v540
    %v909 = vpack.c.b16 %v545, %v541
    %v910 = vpack.c.b16 %v546, %v542
    %v911 = vpack.c.b16 %v547, %v543
    %v912 = vpack.c.b16 %v552, %v548
    %v913 = vpack.c.b16 %v553, %v549
    %v914 = vpack.c.b16 %v554, %v550
    %v915 = vpack.c.b16 %v555, %v551
    %v916 = vpack.c.b16 %v560, %v556
    %v917 = vpack.c.b16 %v561, %v557
    %v918 = vpack.c.b16 %v562, %v558
    %v919 = vpack.c.b16 %v563, %v559
    %v920 = vpack.c.b16 %v568, %v564
    %v921 = vpack.c.b16 %v569, %v565
    %v922 = vpack.c.b16 %v570, %v566
    %v923 = vpack.c.b16 %v571, %v567
    %v924 = vpack.c.b16 %v576, %v572
    %v925 = vpack.c.b16 %v577, %v573
    %v926 = vpack.c.b16 %v578, %v574
    %v927 = vpack.c.b16 %v579, %v575
    %v928 = vpack.c.b16 %v584, %v580
    %v929 = vpack.c.b16 %v585, %v581
    %v930 = vpack.c.b16 %v586, %v582
    %v931 = vpack.c.b16 %v587, %v583
    %v932 = vpack.c.b16 %v592, %v588
    %v933 = vpack.c.b16 %v593, %v589
    %v934 = vpack.c.b16 %v594, %v590
    %v935 = vpack.c.b16 %v595, %v591
    %v936 = vpack.c.b16 %v600, %v596
    %v937 = vpack.c.b16 %v601, %v597
    %v938 = vpack.c.b16 %v602, %v598
    %v939 = vpack.c.b16 %v603, %v599
    %v940 = vpack.c.b16 %v608, %v604
    %v941 = vpack.c.b16 %v609, %v605
    %v942 = vpack.c.b16 %v610, %v606
    %v943 = vpack.c.b16 %v611, %v607
    %v944 = vpack.c.b16 %v616, %v612
    %v945 = vpack.c.b16 %v617, %v613
    %v946 = vpack.c.b16 %v618, %v614
    %v947 = vpack.c.b16 %v619, %v615
    %v948 = vpack.c.b16 %v624, %v620
    %v949 = vpack.c.b16 %v625, %v621
    %v950 = vpack.c.b16 %v626, %v622
    %v951 = vpack.c.b16 %v627, %v623
    %v952 = vpack.c.b16 %v632, %v628
    %v953 = vpack.c.b16 %v633, %v629
    %v954 = vpack.c.b16 %v634, %v630
    %v955 = vpack.c.b16 %v635, %v631
    %v956 = vpack.c.b16 %v640, %v636
    %v957 = vpack.c.b16 %v641, %v637
    %v958 = vpack.c.b16 %v642, %v638
    %v959 = vpack.c.b16 %v643, %v639
    %v960 = vpack.c.b16 %v648, %v644
    %v961 = vpack.c.b16 %v649, %v645
    %v962 = vpack.c.b16 %v650, %v646
    %v963 = vpack.c.b16 %v651, %v647
    %v964 = vpack.c.b16 %v656, %v652
    %v965 = vpack.c.b16 %v657, %v653
    %v966 = vpack.c.b16 %v658, %v654
    %v967 = vpack.c.b16 %v659, %v655
    %v968 = vpack.c.b16 %v664, %v660
    %v969 = vpack.c.b16 %v665, %v661
    %v970 = vpack.c.b16 %v666, %v662
    %v971 = vpack.c.b16 %v667, %v663
    %v972 = vpack.c.b16 %v672, %v668
    %v973 = vpack.c.b16 %v673, %v669
    %v974 = vpack.c.b16 %v674, %v670
    %v975 = vpack.c.b16 %v675, %v671
    %v976 = vpack.c.b16 %v680, %v676
    %v977 = vpack.c.b16 %v681, %v677
    %v978 = vpack.c.b16 %v682, %v678
    %v979 = vpack.c.b16 %v683, %v679
    %v980 = vpack.c.b16 %v688, %v684
    %v981 = vpack.c.b16 %v689, %v685
    %v982 = vpack.c.b16 %v690, %v686
    %v983 = vpack.c.b16 %v691, %v687
    %v984 = vpack.c.b16 %v696, %v692
    %v985 = vpack.c.b16 %v697, %v693
    %v986 = vpack.c.b16 %v698, %v694
    %v987 = vpack.c.b16 %v699, %v695
    %v988 = vpack.c.b16 %v704, %v700
    %v989 = vpack.c.b16 %v705, %v701
    %v990 = vpack.c.b16 %v706, %v702
    %v991 = vpack.c.b16 %v707, %v703
    %v992 = vpack.c.b16 %v712, %v708
    %v993 = vpack.c.b16 %v713, %v709
    %v994 = vpack.c.b16 %v714, %v710
    %v995 = vpack.c.b16 %v715, %v711
    %v996 = vpack.c.b16 %v720, %v716
    %v997 = vpack.c.b16 %v721, %v717
    %v998 = vpack.c.b16 %v722, %v718
    %v999 = vpack.c.b16 %v723, %v719
    %v1000 = vpack.c.b16 %v728, %v724
    %v1001 = vpack.c.b16 %v729, %v725
    %v1002 = vpack.c.b16 %v730, %v726
    %v1003 = vpack.c.b16 %v731, %v727
    %v1004 = vpack.c.b16 %v736, %v732
    %v1005 = vpack.c.b16 %v737, %v733
    %v1006 = vpack.c.b16 %v738, %v734
    %v1007 = vpack.c.b16 %v739, %v735
    %v1008 = vpack.c.b16 %v744, %v740
    %v1009 = vpack.c.b16 %v745, %v741
    %v1010 = vpack.c.b16 %v746, %v742
    %v1011 = vpack.c.b16 %v747, %v743
    %v1012 = vpack.c.b16 %v752, %v748
    %v1013 = vpack.c.b16 %v753, %v749
    %v1014 = vpack.c.b16 %v754, %v750
    %v1015 = vpack.c.b16 %v755, %v751
    %v1016 = vpack.c.b16 %v760, %v756
    %v1017 = vpack.c.b16 %v761, %v757
    %v1018 = vpack.c.b16 %v762, %v758
    %v1019 = vpack.c.b16 %v763, %v759
    %v1020 = vpack.c.b16 %v768, %v764
    %v1021 = vpack.c.b16 %v769, %v765
    %v1022 = vpack.c.b16 %v770, %v766
    %v1023 = vpack.c.b16 %v771, %v767
    %v1024 = vpack.c.b16 %v776, %v772
    %v1025 = vpack.c.b16 %v777, %v773
    %v1026 = vpack.c.b16 %v778, %v774
    %v1027 = vpack.c.b16 %v779, %v775
    %v1028 = vpack.c.b16 %v784, %v780
    %v1029 = vpack.c.b16 %v785, %v781
    %v1030 = vpack.c.b16 %v786, %v782
    %v1031 = vpack.c.b16 %v787, %v783
    %v1032 = vpack.c.b16 %v792, %v788
    %v1033 = vpack.c.b16 %v793, %v789
    %v1034 = vpack.c.b16 %v794, %v790
    %v1035 = vpack.c.b16 %v795, %v791
    %v1036 = vpack.c.b16 %v800, %v796
    %v1037 = vpack.c.b16 %v801, %v797
    %v1038 = vpack.c.b16 %v802, %v798
    %v1039 = vpack.c.b16 %v803, %v799
    %v1040 = vpack.c.b16 %v808, %v804
    %v1041 = vpack.c.b16 %v809, %v805
    %v1042 = vpack.c.b16 %v810, %v806
    %v1043 = vpack.c.b16 %v811, %v807
    %v1044 = vpack.c.b16 %v816, %v812
    %v1045 = vpack.c.b16 %v817, %v813
    %v1046 = vpack.c.b16 %v818, %v814
    %v1047 = vpack.c.b16 %v819, %v815
    %v1048 = vpack.c.b16 %v824, %v820
    %v1049 = vpack.c.b16 %v825, %v821
    %v1050 = vpack.c.b16 %v826, %v822
    %v1051 = vpack.c.b16 %v827, %v823
    %v1052 = vpack.c.b16 %v832, %v828
    %v1053 = vpack.c.b16 %v833, %v829
    %v1054 = vpack.c.b16 %v834, %v830
    %v1055 = vpack.c.b16 %v835, %v831
    %v1056 = vpack.c.b16 %v840, %v836
    %v1057 = vpack.c.b16 %v841, %v837
    %v1058 = vpack.c.b16 %v842, %v838
    %v1059 = vpack.c.b16 %v843, %v839
    %v1060 = vpack.c.b16 %v848, %v844
    %v1061 = vpack.c.b16 %v849, %v845
    %v1062 = vpack.c.b16 %v850, %v846
    %v1063 = vpack.c.b16 %v851, %v847
    %v1064 = vpack.c.b16 %v856, %v852
    %v1065 = vpack.c.b16 %v857, %v853
    %v1066 = vpack.c.b16 %v858, %v854
    %v1067 = vpack.c.b16 %v859, %v855
    %v1068 = vpack.c.b16 %v864, %v860
    %v1069 = vpack.c.b16 %v865, %v861
    %v1070 = vpack.c.b16 %v866, %v862
    %v1071 = vpack.c.b16 %v867, %v863
    %v1072 = vpack.c.b16 %v872, %v868
    %v1073 = vpack.c.b16 %v873, %v869
    %v1074 = vpack.c.b16 %v874, %v870
    %v1075 = vpack.c.b16 %v875, %v871
    %v1076 = vpack.c.b16 %v880, %v876
    %v1077 = vpack.c.b16 %v881, %v877
    %v1078 = vpack.c.b16 %v882, %v878
    %v1079 = vpack.c.b16 %v883, %v879
    %v1080 = vpack.c.b16 %v888, %v884
    %v1081 = vpack.c.b16 %v889, %v885
    %v1082 = vpack.c.b16 %v890, %v886
    %v1083 = vpack.c.b16 %v891, %v887
    %1276 = vmatprep.subr.bf16.mxu0 %v893
    %1277 = vmatpush1.bf16.msra.mxu0 %v892
    %1278 = vmatprep.subr.bf16.mxu0 %v897
    %1279 = vmatpush1.bf16.msra.mxu0 %v896
    %1280 = vmatprep.subr.bf16.mxu0 %v901
    %1281 = vmatpush1.bf16.msra.mxu0 %v900
    %1282 = vmatprep.subr.bf16.mxu0 %v905
    %1283 = vmatpush1.bf16.msra.mxu0 %v904
    %1284 = vmatprep.subr.bf16.mxu0 %v909
    %1285 = vmatpush1.bf16.msra.mxu0 %v908
    %1286 = vmatprep.subr.bf16.mxu0 %v913
    %1287 = vmatpush1.bf16.msra.mxu0 %v912
    %1288 = vmatprep.subr.bf16.mxu0 %v917
    %1289 = vmatpush1.bf16.msra.mxu0 %v916
    %1290 = vmatprep.subr.bf16.mxu0 %v921
    %1291 = vmatpush1.bf16.msra.mxu0 %v920
    %1292 = vmatprep.subr.bf16.mxu0 %v925
    %1293 = vmatpush1.bf16.msra.mxu0 %v924
    %1294 = vmatprep.subr.bf16.mxu0 %v929
    %1295 = vmatpush1.bf16.msra.mxu0 %v928
    %1296 = vmatprep.subr.bf16.mxu0 %v933
    %1297 = vmatpush1.bf16.msra.mxu0 %v932
    %1298 = vmatprep.subr.bf16.mxu0 %v937
    %1299 = vmatpush1.bf16.msra.mxu0 %v936
    %1300 = vmatprep.subr.bf16.mxu0 %v941
    %1301 = vmatpush1.bf16.msra.mxu0 %v940
    %1302 = vmatprep.subr.bf16.mxu0 %v945
    %1303 = vmatpush1.bf16.msra.mxu0 %v944
    %1304 = vmatprep.subr.bf16.mxu0 %v949
    %1305 = vmatpush1.bf16.msra.mxu0 %v948
    %1306 = vmatprep.subr.bf16.mxu0 %v953
    %1307 = vmatpush1.bf16.msra.mxu0 %v952
    %1308 = vmatprep.mubr.bf16.mxu0 %v97
    %1309 = vmatmul.mubr.bf16.gmra.mrb[0].mxu0 %v96
    %v1310 = vpop.f32.mrb[0].mxu0
    %v1311 = vadd.f32 %v299, %v1310
    %v1312 = vpop.f32.mrb[0].mxu0
    %v1313 = vadd.f32 %v303, %v1312
    %v1314 = vpop.f32.mrb[0].mxu0
    %v1315 = vpop.f32.mrb[0].mxu0
    %1316 = vdwg.mxu0
    %1317 = vmatprep.subr.bf16.mxu0 %v957
    %1318 = vmatpush1.bf16.msra.mxu0 %v956
    %1319 = vmatprep.subr.bf16.mxu0 %v961
    %1320 = vmatpush1.bf16.msra.mxu0 %v960
    %1321 = vmatprep.subr.bf16.mxu0 %v965
    %1322 = vmatpush1.bf16.msra.mxu0 %v964
    %1323 = vmatprep.subr.bf16.mxu0 %v969
    %1324 = vmatpush1.bf16.msra.mxu0 %v968
    %1325 = vmatprep.subr.bf16.mxu0 %v973
    %1326 = vmatpush1.bf16.msra.mxu0 %v972
    %1327 = vmatprep.subr.bf16.mxu0 %v977
    %1328 = vmatpush1.bf16.msra.mxu0 %v976
    %1329 = vmatprep.subr.bf16.mxu0 %v981
    %1330 = vmatpush1.bf16.msra.mxu0 %v980
    %1331 = vmatprep.subr.bf16.mxu0 %v985
    %1332 = vmatpush1.bf16.msra.mxu0 %v984
    %1333 = vmatprep.subr.bf16.mxu0 %v989
    %1334 = vmatpush1.bf16.msra.mxu0 %v988
    %1335 = vmatprep.subr.bf16.mxu0 %v993
    %1336 = vmatpush1.bf16.msra.mxu0 %v992
    %1337 = vmatprep.subr.bf16.mxu0 %v997
    %1338 = vmatpush1.bf16.msra.mxu0 %v996
    %1339 = vmatprep.subr.bf16.mxu0 %v1001
    %1340 = vmatpush1.bf16.msra.mxu0 %v1000
    %1341 = vmatprep.subr.bf16.mxu0 %v1005
    %1342 = vmatpush1.bf16.msra.mxu0 %v1004
    %1343 = vmatprep.subr.bf16.mxu0 %v1009
    %1344 = vmatpush1.bf16.msra.mxu0 %v1008
    %1345 = vmatprep.subr.bf16.mxu0 %v1013
    %1346 = vmatpush1.bf16.msra.mxu0 %v1012
    %1347 = vmatprep.subr.bf16.mxu0 %v1017
    %1348 = vmatpush1.bf16.msra.mxu0 %v1016
    %1349 = vmatprep.mubr.bf16.mxu0 %v99
    %1350 = vmatmul.mubr.bf16.gmra.mrb[0].mxu0 %v98
    %v1351 = vpop.f32.mrb[0].mxu0
    %v1352 = vadd.f32 %v1311, %v1351
    %v1353 = vpop.f32.mrb[0].mxu0
    %v1354 = vadd.f32 %v1313, %v1353
    %v1355 = vpop.f32.mrb[0].mxu0
    %v1356 = vpop.f32.mrb[0].mxu0
    %1357 = vdwg.mxu0
    %1358 = vmatprep.subr.bf16.mxu0 %v1021
    %1359 = vmatpush1.bf16.msra.mxu0 %v1020
    %1360 = vmatprep.subr.bf16.mxu0 %v1025
    %1361 = vmatpush1.bf16.msra.mxu0 %v1024
    %1362 = vmatprep.subr.bf16.mxu0 %v1029
    %1363 = vmatpush1.bf16.msra.mxu0 %v1028
    %1364 = vmatprep.subr.bf16.mxu0 %v1033
    %1365 = vmatpush1.bf16.msra.mxu0 %v1032
    %1366 = vmatprep.subr.bf16.mxu0 %v1037
    %1367 = vmatpush1.bf16.msra.mxu0 %v1036
    %1368 = vmatprep.subr.bf16.mxu0 %v1041
    %1369 = vmatpush1.bf16.msra.mxu0 %v1040
    %1370 = vmatprep.subr.bf16.mxu0 %v1045
    %1371 = vmatpush1.bf16.msra.mxu0 %v1044
    %1372 = vmatprep.subr.bf16.mxu0 %v1049
    %1373 = vmatpush1.bf16.msra.mxu0 %v1048
    %1374 = vmatprep.subr.bf16.mxu0 %v1053
    %1375 = vmatpush1.bf16.msra.mxu0 %v1052
    %1376 = vmatprep.subr.bf16.mxu0 %v1057
    %1377 = vmatpush1.bf16.msra.mxu0 %v1056
    %1378 = vmatprep.subr.bf16.mxu0 %v1061
    %1379 = vmatpush1.bf16.msra.mxu0 %v1060
    %1380 = vmatprep.subr.bf16.mxu0 %v1065
    %1381 = vmatpush1.bf16.msra.mxu0 %v1064
    %1382 = vmatprep.subr.bf16.mxu0 %v1069
    %1383 = vmatpush1.bf16.msra.mxu0 %v1068
    %1384 = vmatprep.subr.bf16.mxu0 %v1073
    %1385 = vmatpush1.bf16.msra.mxu0 %v1072
    %1386 = vmatprep.subr.bf16.mxu0 %v1077
    %1387 = vmatpush1.bf16.msra.mxu0 %v1076
    %1388 = vmatprep.subr.bf16.mxu0 %v1081
    %1389 = vmatpush1.bf16.msra.mxu0 %v1080
    %1390 = vmatprep.mubr.bf16.mxu0 %v101
    %1391 = vmatmul.mubr.bf16.gmra.mrb[0].mxu0 %v100
    %v1392 = vpop.f32.mrb[0].mxu0
    %v1393 = vadd.f32 %v1352, %v1392
    %v1394 = vpop.f32.mrb[0].mxu0
    %v1395 = vadd.f32 %v1354, %v1394
    %v1396 = vpop.f32.mrb[0].mxu0
    %v1397 = vpop.f32.mrb[0].mxu0
    %1398 = vdwg.mxu0
    %1399 = vmatprep.subr.bf16.mxu0 %v895
    %1400 = vmatpush1.bf16.msra.mxu0 %v894
    %1401 = vmatprep.subr.bf16.mxu0 %v899
    %1402 = vmatpush1.bf16.msra.mxu0 %v898
    %1403 = vmatprep.subr.bf16.mxu0 %v903
    %1404 = vmatpush1.bf16.msra.mxu0 %v902
    %1405 = vmatprep.subr.bf16.mxu0 %v907
    %1406 = vmatpush1.bf16.msra.mxu0 %v906
    %1407 = vmatprep.subr.bf16.mxu0 %v911
    %1408 = vmatpush1.bf16.msra.mxu0 %v910
    %1409 = vmatprep.subr.bf16.mxu0 %v915
    %1410 = vmatpush1.bf16.msra.mxu0 %v914
    %1411 = vmatprep.subr.bf16.mxu0 %v919
    %1412 = vmatpush1.bf16.msra.mxu0 %v918
    %1413 = vmatprep.subr.bf16.mxu0 %v923
    %1414 = vmatpush1.bf16.msra.mxu0 %v922
    %1415 = vmatprep.subr.bf16.mxu0 %v927
    %1416 = vmatpush1.bf16.msra.mxu0 %v926
    %1417 = vmatprep.subr.bf16.mxu0 %v931
    %1418 = vmatpush1.bf16.msra.mxu0 %v930
    %1419 = vmatprep.subr.bf16.mxu0 %v935
    %1420 = vmatpush1.bf16.msra.mxu0 %v934
    %1421 = vmatprep.subr.bf16.mxu0 %v939
    %1422 = vmatpush1.bf16.msra.mxu0 %v938
    %1423 = vmatprep.subr.bf16.mxu0 %v943
    %1424 = vmatpush1.bf16.msra.mxu0 %v942
    %1425 = vmatprep.subr.bf16.mxu0 %v947
    %1426 = vmatpush1.bf16.msra.mxu0 %v946
    %1427 = vmatprep.subr.bf16.mxu0 %v951
    %1428 = vmatpush1.bf16.msra.mxu0 %v950
    %1429 = vmatprep.subr.bf16.mxu0 %v955
    %1430 = vmatpush1.bf16.msra.mxu0 %v954
    %1431 = vmatprep.mubr.bf16.mxu0 %v97
    %1432 = vmatmul.mubr.bf16.gmra.mrb[0].mxu0 %v96
    %v1433 = vpop.f32.mrb[0].mxu0
    %v1434 = vadd.f32 %v307, %v1433
    %v1435 = vpop.f32.mrb[0].mxu0
    %v1436 = vadd.f32 %v311, %v1435
    %v1437 = vpop.f32.mrb[0].mxu0
    %v1438 = vpop.f32.mrb[0].mxu0
    %1439 = vdwg.mxu0
    %1440 = vmatprep.subr.bf16.mxu0 %v959
    %1441 = vmatpush1.bf16.msra.mxu0 %v958
    %1442 = vmatprep.subr.bf16.mxu0 %v963
    %1443 = vmatpush1.bf16.msra.mxu0 %v962
    %1444 = vmatprep.subr.bf16.mxu0 %v967
    %1445 = vmatpush1.bf16.msra.mxu0 %v966
    %1446 = vmatprep.subr.bf16.mxu0 %v971
    %1447 = vmatpush1.bf16.msra.mxu0 %v970
    %1448 = vmatprep.subr.bf16.mxu0 %v975
    %1449 = vmatpush1.bf16.msra.mxu0 %v974
    %1450 = vmatprep.subr.bf16.mxu0 %v979
    %1451 = vmatpush1.bf16.msra.mxu0 %v978
    %1452 = vmatprep.subr.bf16.mxu0 %v983
    %1453 = vmatpush1.bf16.msra.mxu0 %v982
    %1454 = vmatprep.subr.bf16.mxu0 %v987
    %1455 = vmatpush1.bf16.msra.mxu0 %v986
    %1456 = vmatprep.subr.bf16.mxu0 %v991
    %1457 = vmatpush1.bf16.msra.mxu0 %v990
    %1458 = vmatprep.subr.bf16.mxu0 %v995
    %1459 = vmatpush1.bf16.msra.mxu0 %v994
    %1460 = vmatprep.subr.bf16.mxu0 %v999
    %1461 = vmatpush1.bf16.msra.mxu0 %v998
    %1462 = vmatprep.subr.bf16.mxu0 %v1003
    %1463 = vmatpush1.bf16.msra.mxu0 %v1002
    %1464 = vmatprep.subr.bf16.mxu0 %v1007
    %1465 = vmatpush1.bf16.msra.mxu0 %v1006
    %1466 = vmatprep.subr.bf16.mxu0 %v1011
    %1467 = vmatpush1.bf16.msra.mxu0 %v1010
    %1468 = vmatprep.subr.bf16.mxu0 %v1015
    %1469 = vmatpush1.bf16.msra.mxu0 %v1014
    %1470 = vmatprep.subr.bf16.mxu0 %v1019
    %1471 = vmatpush1.bf16.msra.mxu0 %v1018
    %1472 = vmatprep.mubr.bf16.mxu0 %v99
    %1473 = vmatmul.mubr.bf16.gmra.mrb[0].mxu0 %v98
    %v1474 = vpop.f32.mrb[0].mxu0
    %v1475 = vadd.f32 %v1434, %v1474
    %v1476 = vpop.f32.mrb[0].mxu0
    %v1477 = vadd.f32 %v1436, %v1476
    %v1478 = vpop.f32.mrb[0].mxu0
    %v1479 = vpop.f32.mrb[0].mxu0
    %1480 = vdwg.mxu0
    %1481 = vmatprep.subr.bf16.mxu0 %v1023
    %1482 = vmatpush1.bf16.msra.mxu0 %v1022
    %1483 = vmatprep.subr.bf16.mxu0 %v1027
    %1484 = vmatpush1.bf16.msra.mxu0 %v1026
    %1485 = vmatprep.subr.bf16.mxu0 %v1031
    %1486 = vmatpush1.bf16.msra.mxu0 %v1030
    %1487 = vmatprep.subr.bf16.mxu0 %v1035
    %1488 = vmatpush1.bf16.msra.mxu0 %v1034
    %1489 = vmatprep.subr.bf16.mxu0 %v1039
    %1490 = vmatpush1.bf16.msra.mxu0 %v1038
    %1491 = vmatprep.subr.bf16.mxu0 %v1043
    %1492 = vmatpush1.bf16.msra.mxu0 %v1042
    %1493 = vmatprep.subr.bf16.mxu0 %v1047
    %1494 = vmatpush1.bf16.msra.mxu0 %v1046
    %1495 = vmatprep.subr.bf16.mxu0 %v1051
    %1496 = vmatpush1.bf16.msra.mxu0 %v1050
    %1497 = vmatprep.subr.bf16.mxu0 %v1055
    %1498 = vmatpush1.bf16.msra.mxu0 %v1054
    %1499 = vmatprep.subr.bf16.mxu0 %v1059
    %1500 = vmatpush1.bf16.msra.mxu0 %v1058
    %1501 = vmatprep.subr.bf16.mxu0 %v1063
    %1502 = vmatpush1.bf16.msra.mxu0 %v1062
    %1503 = vmatprep.subr.bf16.mxu0 %v1067
    %1504 = vmatpush1.bf16.msra.mxu0 %v1066
    %1505 = vmatprep.subr.bf16.mxu0 %v1071
    %1506 = vmatpush1.bf16.msra.mxu0 %v1070
    %1507 = vmatprep.subr.bf16.mxu0 %v1075
    %1508 = vmatpush1.bf16.msra.mxu0 %v1074
    %1509 = vmatprep.subr.bf16.mxu0 %v1079
    %1510 = vmatpush1.bf16.msra.mxu0 %v1078
    %1511 = vmatprep.subr.bf16.mxu0 %v1083
    %1512 = vmatpush1.bf16.msra.mxu0 %v1082
    %1513 = vmatprep.mubr.bf16.mxu0 %v101
    %1514 = vmatmul.mubr.bf16.gmra.mrb[0].mxu0 %v100
    %v1515 = vpop.f32.mrb[0].mxu0
    %v1516 = vadd.f32 %v1475, %v1515
    %v1517 = vpop.f32.mrb[0].mxu0
    %v1518 = vadd.f32 %v1477, %v1517
    %v1519 = vpop.f32.mrb[0].mxu0
    %v1520 = vpop.f32.mrb[0].mxu0
    %1521 = vdwg.mxu0
    %v1522 = vmax.f32 %v1393, 0.0
    %v1523 = vmax.f32 %v1395, 0.0
    %v1524 = vmax.f32 %v1516, 0.0
    %v1525 = vmax.f32 %v1518, 0.0
    %v1526 = vpack.c.bf16 %v1522, %v1522
    %v1527 = vpack.c.bf16 %v1523, %v1523
    %v1528 = vpack.c.bf16 %v1524, %v1524
    %v1529 = vpack.c.bf16 %v1525, %v1525
    %v1530 = vld [vmem:[#allocation7] sm:$0xf]
    %v1531 = vld [vmem:[#allocation7 + $0x4] sm:$0xf]
    %v1532 = vld [vmem:[#allocation7 + $0x8] sm:$0xf]
    %v1533 = vld [vmem:[#allocation7 + $0xc] sm:$0xf]
    %v1534 = vld [vmem:[#allocation7 + $0x10] sm:$0xf]
    %v1535 = vld [vmem:[#allocation7 + $0x14] sm:$0xf]
    %v1536 = vld [vmem:[#allocation7 + $0x18] sm:$0xf]
    %v1537 = vld [vmem:[#allocation7 + $0x1c] sm:$0xf]
    %v1538 = vld [vmem:[#allocation7 + $0x20] sm:$0xf]
    %v1539 = vld [vmem:[#allocation7 + $0x24] sm:$0xf]
    %v1540 = vld [vmem:[#allocation7 + $0x28] sm:$0xf]
    %v1541 = vld [vmem:[#allocation7 + $0x2c] sm:$0xf]
    %v1542 = vld [vmem:[#allocation7 + $0x30] sm:$0xf]
    %v1543 = vld [vmem:[#allocation7 + $0x34] sm:$0xf]
    %v1544 = vld [vmem:[#allocation7 + $0x38] sm:$0xf]
    %v1545 = vld [vmem:[#allocation7 + $0x3c] sm:$0xf]
    %v1546 = vld [vmem:[#allocation7 + $0x40] sm:$0xf]
    %v1547 = vld [vmem:[#allocation7 + $0x44] sm:$0xf]
    %v1548 = vld [vmem:[#allocation7 + $0x48] sm:$0xf]
    %v1549 = vld [vmem:[#allocation7 + $0x4c] sm:$0xf]
    %v1550 = vld [vmem:[#allocation7 + $0x50] sm:$0xf]
    %v1551 = vld [vmem:[#allocation7 + $0x54] sm:$0xf]
    %v1552 = vld [vmem:[#allocation7 + $0x58] sm:$0xf]
    %v1553 = vld [vmem:[#allocation7 + $0x5c] sm:$0xf]
    %v1554 = vld [vmem:[#allocation7 + $0x60] sm:$0xf]
    %v1555 = vld [vmem:[#allocation7 + $0x64] sm:$0xf]
    %v1556 = vld [vmem:[#allocation7 + $0x68] sm:$0xf]
    %v1557 = vld [vmem:[#allocation7 + $0x6c] sm:$0xf]
    %v1558 = vld [vmem:[#allocation7 + $0x70] sm:$0xf]
    %v1559 = vld [vmem:[#allocation7 + $0x74] sm:$0xf]
    %v1560 = vld [vmem:[#allocation7 + $0x78] sm:$0xf]
    %v1561 = vld [vmem:[#allocation7 + $0x7c] sm:$0xf]
    %v1562 = vld [vmem:[#allocation7 + $0x80] sm:$0xf]
    %v1563 = vld [vmem:[#allocation7 + $0x84] sm:$0xf]
    %v1564 = vld [vmem:[#allocation7 + $0x88] sm:$0xf]
    %v1565 = vld [vmem:[#allocation7 + $0x8c] sm:$0xf]
    %v1566 = vld [vmem:[#allocation7 + $0x90] sm:$0xf]
    %v1567 = vld [vmem:[#allocation7 + $0x94] sm:$0xf]
    %v1568 = vld [vmem:[#allocation7 + $0x98] sm:$0xf]
    %v1569 = vld [vmem:[#allocation7 + $0x9c] sm:$0xf]
    %v1570 = vld [vmem:[#allocation7 + $0xa0] sm:$0xf]
    %v1571 = vld [vmem:[#allocation7 + $0xa4] sm:$0xf]
    %v1572 = vld [vmem:[#allocation7 + $0xa8] sm:$0xf]
    %v1573 = vld [vmem:[#allocation7 + $0xac] sm:$0xf]
    %v1574 = vld [vmem:[#allocation7 + $0xb0] sm:$0xf]
    %v1575 = vld [vmem:[#allocation7 + $0xb4] sm:$0xf]
    %v1576 = vld [vmem:[#allocation7 + $0xb8] sm:$0xf]
    %v1577 = vld [vmem:[#allocation7 + $0xbc] sm:$0xf]
    %v1578 = vld [vmem:[#allocation7 + $0xc0] sm:$0xf]
    %v1579 = vld [vmem:[#allocation7 + $0xc4] sm:$0xf]
    %v1580 = vld [vmem:[#allocation7 + $0xc8] sm:$0xf]
    %v1581 = vld [vmem:[#allocation7 + $0xcc] sm:$0xf]
    %v1582 = vld [vmem:[#allocation7 + $0xd0] sm:$0xf]
    %v1583 = vld [vmem:[#allocation7 + $0xd4] sm:$0xf]
    %v1584 = vld [vmem:[#allocation7 + $0xd8] sm:$0xf]
    %v1585 = vld [vmem:[#allocation7 + $0xdc] sm:$0xf]
    %v1586 = vld [vmem:[#allocation7 + $0xe0] sm:$0xf]
    %v1587 = vld [vmem:[#allocation7 + $0xe4] sm:$0xf]
    %v1588 = vld [vmem:[#allocation7 + $0xe8] sm:$0xf]
    %v1589 = vld [vmem:[#allocation7 + $0xec] sm:$0xf]
    %v1590 = vld [vmem:[#allocation7 + $0xf0] sm:$0xf]
    %v1591 = vld [vmem:[#allocation7 + $0xf4] sm:$0xf]
    %v1592 = vld [vmem:[#allocation7 + $0xf8] sm:$0xf]
    %v1593 = vld [vmem:[#allocation7 + $0xfc] sm:$0xf]
    %v1594 = vld [vmem:[%s4] sm:$0x1]
    %v1596 = vlaneseq
    %v1597 = vshrl.u32 %v1596, 7
    %v1598 = vsub.s32 0, %v1597
    %v1599 = vrot.slane %v1594, %v1598
    %v1665 = vunpack.c.l.b16 %v1530
    %v1666 = vunpack.c.l.b16 %v1531
    %v1667 = vunpack.c.l.b16 %v1532
    %v1668 = vunpack.c.l.b16 %v1533
    %v1669 = vunpack.c.l.b16 %v1534
    %v1670 = vunpack.c.l.b16 %v1535
    %v1671 = vunpack.c.l.b16 %v1536
    %v1672 = vunpack.c.l.b16 %v1537
    %v1673 = vunpack.c.l.b16 %v1538
    %v1674 = vunpack.c.l.b16 %v1539
    %v1675 = vunpack.c.l.b16 %v1540
    %v1676 = vunpack.c.l.b16 %v1541
    %v1677 = vunpack.c.l.b16 %v1542
    %v1678 = vunpack.c.l.b16 %v1543
    %v1679 = vunpack.c.l.b16 %v1544
    %v1680 = vunpack.c.l.b16 %v1545
    %v1681 = vunpack.c.l.b16 %v1546
    %v1682 = vunpack.c.l.b16 %v1547
    %v1683 = vunpack.c.l.b16 %v1548
    %v1684 = vunpack.c.l.b16 %v1549
    %v1685 = vunpack.c.l.b16 %v1550
    %v1686 = vunpack.c.l.b16 %v1551
    %v1687 = vunpack.c.l.b16 %v1552
    %v1688 = vunpack.c.l.b16 %v1553
    %v1689 = vunpack.c.l.b16 %v1554
    %v1690 = vunpack.c.l.b16 %v1555
    %v1691 = vunpack.c.l.b16 %v1556
    %v1692 = vunpack.c.l.b16 %v1557
    %v1693 = vunpack.c.l.b16 %v1558
    %v1694 = vunpack.c.l.b16 %v1559
    %v1695 = vunpack.c.l.b16 %v1560
    %v1696 = vunpack.c.l.b16 %v1561
    %v1697 = vunpack.c.l.b16 %v1562
    %v1698 = vunpack.c.l.b16 %v1563
    %v1699 = vunpack.c.l.b16 %v1564
    %v1700 = vunpack.c.l.b16 %v1565
    %v1701 = vunpack.c.l.b16 %v1566
    %v1702 = vunpack.c.l.b16 %v1567
    %v1703 = vunpack.c.l.b16 %v1568
    %v1704 = vunpack.c.l.b16 %v1569
    %v1705 = vunpack.c.l.b16 %v1570
    %v1706 = vunpack.c.l.b16 %v1571
    %v1707 = vunpack.c.l.b16 %v1572
    %v1708 = vunpack.c.l.b16 %v1573
    %v1709 = vunpack.c.l.b16 %v1574
    %v1710 = vunpack.c.l.b16 %v1575
    %v1711 = vunpack.c.l.b16 %v1576
    %v1712 = vunpack.c.l.b16 %v1577
    %v1713 = vunpack.c.l.b16 %v1578
    %v1714 = vunpack.c.l.b16 %v1579
    %v1715 = vunpack.c.l.b16 %v1580
    %v1716 = vunpack.c.l.b16 %v1581
    %v1717 = vunpack.c.l.b16 %v1582
    %v1718 = vunpack.c.l.b16 %v1583
    %v1719 = vunpack.c.l.b16 %v1584
    %v1720 = vunpack.c.l.b16 %v1585
    %v1721 = vunpack.c.l.b16 %v1586
    %v1722 = vunpack.c.l.b16 %v1587
    %v1723 = vunpack.c.l.b16 %v1588
    %v1724 = vunpack.c.l.b16 %v1589
    %v1725 = vunpack.c.l.b16 %v1590
    %v1726 = vunpack.c.l.b16 %v1591
    %v1727 = vunpack.c.l.b16 %v1592
    %v1728 = vunpack.c.l.b16 %v1593
    %v1729 = vpack.c.b16 %v1666, %v1665
    %v1730 = vpack.c.b16 %v1668, %v1667
    %v1731 = vpack.c.b16 %v1670, %v1669
    %v1732 = vpack.c.b16 %v1672, %v1671
    %v1733 = vpack.c.b16 %v1674, %v1673
    %v1734 = vpack.c.b16 %v1676, %v1675
    %v1735 = vpack.c.b16 %v1678, %v1677
    %v1736 = vpack.c.b16 %v1680, %v1679
    %v1737 = vpack.c.b16 %v1682, %v1681
    %v1738 = vpack.c.b16 %v1684, %v1683
    %v1739 = vpack.c.b16 %v1686, %v1685
    %v1740 = vpack.c.b16 %v1688, %v1687
    %v1741 = vpack.c.b16 %v1690, %v1689
    %v1742 = vpack.c.b16 %v1692, %v1691
    %v1743 = vpack.c.b16 %v1694, %v1693
    %v1744 = vpack.c.b16 %v1696, %v1695
    %v1745 = vpack.c.b16 %v1698, %v1697
    %v1746 = vpack.c.b16 %v1700, %v1699
    %v1747 = vpack.c.b16 %v1702, %v1701
    %v1748 = vpack.c.b16 %v1704, %v1703
    %v1749 = vpack.c.b16 %v1706, %v1705
    %v1750 = vpack.c.b16 %v1708, %v1707
    %v1751 = vpack.c.b16 %v1710, %v1709
    %v1752 = vpack.c.b16 %v1712, %v1711
    %v1753 = vpack.c.b16 %v1714, %v1713
    %v1754 = vpack.c.b16 %v1716, %v1715
    %v1755 = vpack.c.b16 %v1718, %v1717
    %v1756 = vpack.c.b16 %v1720, %v1719
    %v1757 = vpack.c.b16 %v1722, %v1721
    %v1758 = vpack.c.b16 %v1724, %v1723
    %v1759 = vpack.c.b16 %v1726, %v1725
    %v1760 = vpack.c.b16 %v1728, %v1727
    %1793 = vmatprep.subr.bf16.mxu0 0
    %1794 = vmatpush1.bf16.msra.mxu0 %v1729
    %1795 = vmatprep.subr.bf16.mxu0 0
    %1796 = vmatpush1.bf16.msra.mxu0 %v1730
    %1797 = vmatprep.subr.bf16.mxu0 0
    %1798 = vmatpush1.bf16.msra.mxu0 %v1731
    %1799 = vmatprep.subr.bf16.mxu0 0
    %1800 = vmatpush1.bf16.msra.mxu0 %v1732
    %1801 = vmatprep.subr.bf16.mxu0 0
    %1802 = vmatpush1.bf16.msra.mxu0 %v1733
    %1803 = vmatprep.subr.bf16.mxu0 0
    %1804 = vmatpush1.bf16.msra.mxu0 %v1734
    %1805 = vmatprep.subr.bf16.mxu0 0
    %1806 = vmatpush1.bf16.msra.mxu0 %v1735
    %1807 = vmatprep.subr.bf16.mxu0 0
    %1808 = vmatpush1.bf16.msra.mxu0 %v1736
    %1809 = vmatprep.subr.bf16.mxu0 0
    %1810 = vmatpush1.bf16.msra.mxu0 %v1737
    %1811 = vmatprep.subr.bf16.mxu0 0
    %1812 = vmatpush1.bf16.msra.mxu0 %v1738
    %1813 = vmatprep.subr.bf16.mxu0 0
    %1814 = vmatpush1.bf16.msra.mxu0 %v1739
    %1815 = vmatprep.subr.bf16.mxu0 0
    %1816 = vmatpush1.bf16.msra.mxu0 %v1740
    %1817 = vmatprep.subr.bf16.mxu0 0
    %1818 = vmatpush1.bf16.msra.mxu0 %v1741
    %1819 = vmatprep.subr.bf16.mxu0 0
    %1820 = vmatpush1.bf16.msra.mxu0 %v1742
    %1821 = vmatprep.subr.bf16.mxu0 0
    %1822 = vmatpush1.bf16.msra.mxu0 %v1743
    %1823 = vmatprep.subr.bf16.mxu0 0
    %1824 = vmatpush1.bf16.msra.mxu0 %v1744
    %1825 = vmatprep.mubr.bf16.mxu0 %v1527
    %1826 = vmatmul.mubr.bf16.gmra.mrb[0].mxu0 %v1526
    %v1827 = vpop.f32.mrb[0].mxu0
    %v1828 = vadd.f32 %v1599, %v1827
    %v1829 = vpop.f32.mrb[0].mxu0
    %v1830 = vpop.f32.mrb[0].mxu0
    %v1831 = vpop.f32.mrb[0].mxu0
    %1832 = vdwg.mxu0
    %1833 = vmatprep.subr.bf16.mxu0 0
    %1834 = vmatpush1.bf16.msra.mxu0 %v1745
    %1835 = vmatprep.subr.bf16.mxu0 0
    %1836 = vmatpush1.bf16.msra.mxu0 %v1746
    %1837 = vmatprep.subr.bf16.mxu0 0
    %1838 = vmatpush1.bf16.msra.mxu0 %v1747
    %1839 = vmatprep.subr.bf16.mxu0 0
    %1840 = vmatpush1.bf16.msra.mxu0 %v1748
    %1841 = vmatprep.subr.bf16.mxu0 0
    %1842 = vmatpush1.bf16.msra.mxu0 %v1749
    %1843 = vmatprep.subr.bf16.mxu0 0
    %1844 = vmatpush1.bf16.msra.mxu0 %v1750
    %1845 = vmatprep.subr.bf16.mxu0 0
    %1846 = vmatpush1.bf16.msra.mxu0 %v1751
    %1847 = vmatprep.subr.bf16.mxu0 0
    %1848 = vmatpush1.bf16.msra.mxu0 %v1752
    %1849 = vmatprep.subr.bf16.mxu0 0
    %1850 = vmatpush1.bf16.msra.mxu0 %v1753
    %1851 = vmatprep.subr.bf16.mxu0 0
    %1852 = vmatpush1.bf16.msra.mxu0 %v1754
    %1853 = vmatprep.subr.bf16.mxu0 0
    %1854 = vmatpush1.bf16.msra.mxu0 %v1755
    %1855 = vmatprep.subr.bf16.mxu0 0
    %1856 = vmatpush1.bf16.msra.mxu0 %v1756
    %1857 = vmatprep.subr.bf16.mxu0 0
    %1858 = vmatpush1.bf16.msra.mxu0 %v1757
    %1859 = vmatprep.subr.bf16.mxu0 0
    %1860 = vmatpush1.bf16.msra.mxu0 %v1758
    %1861 = vmatprep.subr.bf16.mxu0 0
    %1862 = vmatpush1.bf16.msra.mxu0 %v1759
    %1863 = vmatprep.subr.bf16.mxu0 0
    %1864 = vmatpush1.bf16.msra.mxu0 %v1760
    %1865 = vmatprep.mubr.bf16.mxu0 %v1529
    %1866 = vmatmul.mubr.bf16.gmra.mrb[0].mxu0 %v1528
    %v1867 = vpop.f32.mrb[0].mxu0
    %v1868 = vadd.f32 %v1828, %v1867
    %v1869 = vpop.f32.mrb[0].mxu0
    %v1870 = vpop.f32.mrb[0].mxu0
    %v1871 = vpop.f32.mrb[0].mxu0
    %1872 = vdwg.mxu0
    %1873 = vst [vmem:[#allocation8] sm:$0x3] %v1868
    // Predicated region
    $region34: #{tpu_custom_call.1} parent=1 // pred_check
      _
    $region35: #{tpu_custom_call.1} parent=1 // pred_check_branch
      %1875 = sbr.rel (0) target = $region37
    $region36: #{tpu_custom_call.1} parent=1 // pred_region
      %s1877 = ssub.s32 32, 32
      %1878 = vsyncadd [#allocation4], %s1877
      %s1880 = sshll.u32 [#allocation8], 4
      %s1881 = int_to_ptr.vmem [resolvable:$true] %s1880
      %1883 = dma.vmem_to_hbm [thread:$0]  %s1881, 32, %s5, [#allocation4]
    $region37: #{tpu_custom_call.1} parent=1 // pred_fallthru
      _
    // Predicated region
    $region38: #{tpu_custom_call.1} parent=1 // pred_check
      _
    $region39: #{tpu_custom_call.1} parent=1 // pred_check_branch
      %1885 = sbr.rel (0) target = $region41
    $region40: #{tpu_custom_call.1} parent=1 // pred_region
      %1886 = dma.done [#allocation4], 32
    $region41: #{tpu_custom_call.1} parent=1 // pred_fallthru
      _
    %1887 = vsyncpa [#allocation3], 1
    %1888 = vsyncpa [#allocation6], 1
    %1889 = vsyncpa [#allocation4], 1

</llo_original>
